<compile_context>
chip_gen: v6e
topology: v6e:2x2x1
jax: 0.10.0
libtpu: 0.0.40
codegen_flags: <defaults>
</compile_context>

<pallas_src>
import functools

import jax
import jax.numpy as jnp
from jax.experimental import pallas as pl
from jax.experimental.pallas import tpu as pltpu


_CP = 128          # lane-dense padded channel width for all stem outputs
_NCP = 128         # lane-dense padded class width for the classifier
_MAX_TM = 512      # max flat output rows per grid step (tile-size sweep: 512+ ~ HBM roofline)
_VMEM_SPEC = pl.BlockSpec(memory_space=pltpu.MemorySpace.VMEM)


def _round_up(x, m):
    return (x + m - 1) // m * m


# ---------------------------------------------------------------------------
# Pallas kernels
# ---------------------------------------------------------------------------

def _conv_s2d_bn_kernel(x_ref, w_ref, scale_ref, shift_ref, o_ref, *, tm, ws, relu_out):
    """3x3/stride-2 conv as 4 accumulated MXU matmuls on a space-to-depth flattened input.

    x_ref:       (1, Lx, 4*Cin)   whole flattened (zero-padded) image, resident per batch index
    w_ref:       (4, 4*Cin, 128)  bf16 per-tap packed conv weight (Cout zero-padded to 128)
    scale/shift: (1, 128)         f32 folded BatchNorm affine (padding: scale=1, shift=0)
    o_ref:       (1, tm, 128)     bf16, one M-tile of flat output rows
    """
    m0 = pl.program_id(1) * tm
    cout_p = o_ref.shape[-1]
    acc = jnp.zeros((tm, cout_p), jnp.float32)
    # taps (dh, dw) in {0,1}^2 live at flat-row offsets {0, 1, ws, ws+1}
    for t, off in enumerate((0, 1, ws, ws + 1)):
        xv = x_ref[0, pl.ds(m0 + off, tm), :].astype(jnp.bfloat16)
        acc += jnp.dot(xv, w_ref[t], preferred_element_type=jnp.float32)
    y = acc * scale_ref[...] + shift_ref[...]
    if relu_out:
        y = jnp.maximum(y, 0.0)
    o_ref[0] = y.astype(o_ref.dtype)


def _pool_linear_kernel(x_ref, w_ref, b_ref, o_ref):
    """Global average pool + Linear as a single MXU matmul (1/49 pool folded into w)."""
    o_ref[...] = (jnp.dot(x_ref[...], w_ref[...], preferred_element_type=jnp.float32)
                  + b_ref[...])


# ---------------------------------------------------------------------------
# Wrappers around pallas_call
# ---------------------------------------------------------------------------

def conv3x3_s2_bn(x, w_packed, scale, shift, *, relu_out):
    """3x3 stride-2 pad-1 conv (bias=False) + folded BatchNorm (+ optional fused ReLU).

    x:        (B, H, W, Cin)  NHWC (f32 image or bf16 lane-padded activations)
    w_packed: (4, 4*Cin, 128) bf16 packed weight (see _pack_conv3x3_s2_weight)
    scale/shift: (1, 128)     f32
    returns   (B, Ho, Wo, 128) bf16
    """
    B, H, W, Cin = x.shape
    taps, k4, cout_p = w_packed.shape
    assert taps == 4 and k4 == 4 * Cin

    Ho = (H - 1) // 2 + 1
    Wo = (W - 1) // 2 + 1

    # Space-to-depth: pad to even spatial dims, fold each 2x2 pixel block into channels,
    # then flatten spatial -> flat rows.  The 3x3/s2 conv becomes a 2x2/s1 conv, i.e. four
    # fixed flat-row offsets, so no im2col patch matrix is ever materialized in HBM.
    pad_h = 1 + (H % 2)
    pad_w = 1 + (W % 2)
    xp = jnp.pad(x, ((0, 0), (1, pad_h), (1, pad_w), (0, 0)))
    Hs = (H + 1 + pad_h) // 2        # == Ho + 1
    Ws = (W + 1 + pad_w) // 2        # == Wo + 1
    xs = (xp.reshape(B, Hs, 2, Ws, 2, Cin)
            .transpose(0, 1, 3, 2, 4, 5)
            .reshape(B, Hs * Ws, 4 * Cin))

    m_out = Ho * Ws                              # flat output rows (incl. one junk column)
    tm = min(_MAX_TM, _round_up(m_out, 8))       # output M-tile, multiple of 8
    n_m = pl.cdiv(m_out, tm)
    m_pad = n_m * tm
    lx = m_pad + Ws + 1                          # highest flat row any tap can read (excl.)
    xs = jnp.pad(xs, ((0, 0), (0, lx - Hs * Ws), (0, 0)))

    itemsize_x = xs.dtype.itemsize
    flops = 2 * B * m_pad * k4 * cout_p * 4
    bytes_accessed = (xs.size * itemsize_x + w_packed.size * 2
                      + (scale.size + shift.size) * 4 + B * m_pad * cout_p * 2)
    x_blk = lx * k4 * itemsize_x
    o_blk = tm * cout_p * 2
    w_blk = 4 * k4 * cout_p * 2
    # Budget for double-buffered x/out blocks + resident weights, with headroom; keep well
    # under the v7x 64 MiB physical VMEM.
    vmem_limit = int(min(48 * 2 ** 20, max(16 * 2 ** 20, 4 * (x_blk + o_blk) + 2 * w_blk)))

    out = pl.pallas_call(
        functools.partial(_conv_s2d_bn_kernel, tm=tm, ws=Ws, relu_out=relu_out),
        out_shape=jax.ShapeDtypeStruct((B, m_pad, cout_p), jnp.bfloat16),
        grid=(B, n_m),
        in_specs=[
            pl.BlockSpec((1, lx, k4), lambda b, m: (b, 0, 0)),         # resident per image
            pl.BlockSpec((4, k4, cout_p), lambda b, m: (0, 0, 0)),     # weights resident
            pl.BlockSpec((1, cout_p), lambda b, m: (0, 0)),
            pl.BlockSpec((1, cout_p), lambda b, m: (0, 0)),
        ],
        out_specs=pl.BlockSpec((1, tm, cout_p), lambda b, m: (b, m, 0)),
        compiler_params=pltpu.CompilerParams(
            dimension_semantics=("parallel", "parallel"),
            vmem_limit_bytes=vmem_limit),
        cost_estimate=pl.CostEstimate(flops=flops, transcendentals=0,
                                      bytes_accessed=bytes_accessed),
    )(xs, w_packed, scale, shift)

    # Drop junk rows / the junk column introduced by the flat-with-halo layout.
    return out[:, :m_out, :].reshape(B, Ho, Ws, cout_p)[:, :, :Wo, :]


def gap_linear(x, w_pool, b, n_classes):
    """AvgPool2d over the full (7x7) map + Linear as one lane-dense MXU matmul."""
    B, H, W, cp = x.shape
    assert w_pool.shape[0] == H * W * cp
    xf = x.reshape(B, H * W * cp)
    out = pl.pallas_call(
        _pool_linear_kernel,
        out_shape=jax.ShapeDtypeStruct((B, w_pool.shape[1]), jnp.float32),
        in_specs=[_VMEM_SPEC, _VMEM_SPEC, _VMEM_SPEC],
        out_specs=_VMEM_SPEC,
    )(xf, w_pool, b)
    return out[:, :n_classes]


# ---------------------------------------------------------------------------
# Weight packing (space-to-depth conv taps, lane-dense padding, folded pooling)
# ---------------------------------------------------------------------------

def _pack_conv3x3_s2_weight(w, cin_pad, cout_pad, dtype=jnp.bfloat16):
    """(3,3,Cin,Cout) conv weight -> (4, 4*cin_pad, cout_pad) per-2x2-tap packed weight."""
    _, _, cin, cout = w.shape
    packed = jnp.zeros((2, 2, 2, 2, cin_pad, cout_pad), jnp.float32)  # (dh, dw, ph, pw, ci, co)
    for kh in range(3):
        for kw in range(3):
            dh, ph = divmod(kh, 2)
            dw, pw = divmod(kw, 2)
            packed = packed.at[dh, dw, ph, pw, :cin, :cout].set(w[kh, kw])
    return packed.reshape(4, 4 * cin_pad, cout_pad).astype(dtype)


def _pack_pool_linear_weight(lin_w, c_pad, n_pad, spatial, dtype=jnp.bfloat16):
    """Fold the 1/spatial average pool into the Linear weight: (spatial*c_pad, n_pad)."""
    c, n = lin_w.shape
    wp = jnp.zeros((c_pad, n_pad), jnp.float32).at[:c, :n].set(lin_w)
    return jnp.tile(wp / float(spatial), (spatial, 1)).astype(dtype)


# ---------------------------------------------------------------------------
# Deterministic parameter construction (mirrors module __init__ shapes, eval mode)
# ---------------------------------------------------------------------------

def init_params(key, C, n_classes, input_size):
    ks = jax.random.split(key, 8)

    def conv_w(k, cin, cout):
        fan_in = 9 * cin
        return jax.random.normal(k, (3, 3, cin, cout), jnp.float32) / jnp.sqrt(float(fan_in))

    def bn_folded(k, c):
        g = 1.0 + 0.1 * jax.random.normal(k, (c,), jnp.float32)
        b = 0.05 * jax.random.normal(jax.random.fold_in(k, 1), (c,), jnp.float32)
        m = 0.02 * jax.random.normal(jax.random.fold_in(k, 2), (c,), jnp.float32)
        v = jnp.abs(1.0 + 0.1 * jax.random.normal(jax.random.fold_in(k, 3), (c,), jnp.float32))
        scale = g / jnp.sqrt(v + 1e-5)
        shift = b - m * scale
        scale_p = jnp.ones((1, _CP), jnp.float32).at[0, :c].set(scale)   # pad scale=1
        shift_p = jnp.zeros((1, _CP), jnp.float32).at[0, :c].set(shift)  # pad shift=0
        return scale_p, shift_p

    spatial = (input_size // 8) ** 2   # stems reduce 8x; AvgPool2d(7) is global on a 7x7 map

    w1 = conv_w(ks[0], 3, C // 2)
    w2 = conv_w(ks[1], C // 2, C)
    w3 = conv_w(ks[2], C, C)
    lin_w = jax.random.normal(ks[3], (C, n_classes), jnp.float32) / jnp.sqrt(float(C))
    lin_b = 0.01 * jax.random.normal(ks[4], (n_classes,), jnp.float32)

    sc1, sh1 = bn_folded(ks[5], C // 2)
    sc2, sh2 = bn_folded(ks[6], C)
    sc3, sh3 = bn_folded(ks[7], C)

    return {
        # stem0: Conv(3->C//2, 3x3 s2 p1) + BN + ReLU + Conv(C//2->C, 3x3 s2 p1) + BN
        "stem0_w1": _pack_conv3x3_s2_weight(w1, 3, _CP),
        "stem0_scale1": sc1, "stem0_shift1": sh1,
        "stem0_w2": _pack_conv3x3_s2_weight(w2, _CP, _CP),
        "stem0_scale2": sc2, "stem0_shift2": sh2,
        # stem1: ReLU + Conv(C->C, 3x3 s2 p1) + BN
        "stem1_w": _pack_conv3x3_s2_weight(w3, _CP, _CP),
        "stem1_scale": sc3, "stem1_shift": sh3,
        # classifier: AvgPool2d(7) folded into Linear(C_p, n_classes)
        "lin_w_pool": _pack_pool_linear_weight(lin_w, _CP, _NCP, spatial),
        "lin_b": jnp.zeros((1, _NCP), jnp.float32).at[0, :n_classes].set(lin_b),
    }


# ---------------------------------------------------------------------------
# Model forward (AugmentCNNImageNet.forward, imagenet_stem_relu=True, eval mode)
# ---------------------------------------------------------------------------

def augment_cnn_imagenet_forward(x_nchw, params):
    # NCHW -> NHWC; the raw image stays f32 (tiny; conv1's tap loads stay on 32-bit data).
    x = jnp.transpose(x_nchw, (0, 2, 3, 1)).astype(jnp.float32)

    # stem0
    s0 = conv3x3_s2_bn(x, params["stem0_w1"], params["stem0_scale1"],
                       params["stem0_shift1"], relu_out=True)
    # stem1's leading ReLU is fused here as relu_out (elementwise; s0 is only consumed by
    # stem1 since the cell stack is skipped) -> identical math, done once at 1x size.
    s0 = conv3x3_s2_bn(s0, params["stem0_w2"], params["stem0_scale2"],
                       params["stem0_shift2"], relu_out=True)
    # stem1
    s1 = conv3x3_s2_bn(s0, params["stem1_w"], params["stem1_scale"],
                       params["stem1_shift"], relu_out=False)

    # TODO(synk): AugmentCell stack depends on an external genotype/ops module that is not
    # provided; cells are skipped (s0, s1 pass through), so C_p == C here.

    logits = gap_linear(s1, params["lin_w_pool"], params["lin_b"],
                        n_classes=int(jnp.shape(params["lin_b"])[1]) and _real_n_classes)
    aux_logits = None  # auxiliary=False / not self.training
    return logits, aux_logits


_real_n_classes = 10  # set in __main__ before calling the forward


# ---------------------------------------------------------------------------
# Demo
# ---------------------------------------------------------------------------

if __name__ == "__main__":
    key = jax.random.PRNGKey(0)
    k_x, k_p = jax.random.split(key)

    B, C_in, input_size = 2, 3, 56   # 56 -> 28 -> 14 -> 7, so AvgPool2d(7) -> 1x1
    C, n_classes = 16, 10
    _real_n_classes = n_classes

    x = jax.random.normal(k_x, (B, C_in, input_size, input_size), jnp.float32)
    params = init_params(k_p, C, n_classes, input_size)

    logits, aux_logits = augment_cnn_imagenet_forward(x, params)
    logits = jax.block_until_ready(logits)

    assert logits.shape == (B, n_classes), logits.shape
    assert aux_logits is None
    assert bool(jnp.all(jnp.isfinite(logits)))
    print("KERNEL_OK")
</pallas_src>

<mosaic_0001>
module attributes {stable_mosaic.version = 11 : i64} {
  func.func @_conv_s2d_bn_kernel(%arg0: i32, %arg1: i32, %arg2: memref<1x1054x12xf32, #tpu.memory_space<vmem>>, %arg3: memref<4x12x128xbf16, #tpu.memory_space<vmem>>, %arg4: memref<1x128xf32, #tpu.memory_space<vmem>>, %arg5: memref<1x128xf32, #tpu.memory_space<vmem>>, %arg6: memref<1x512x128xbf16, #tpu.memory_space<vmem>>) attributes {dimension_semantics = [#tpu.dimension_semantics<parallel>, #tpu.dimension_semantics<parallel>], iteration_bounds = array<i64: 2, 2>, scalar_prefetch = 0 : i64, scratch_operands = 0 : i64, tpu.core_type = #tpu.core_type<tc>, window_params = [{transform_indices = @transform_0, window_bounds = array<i64: 1, 1054, 12>}, {pipeline_mode = #tpu.pipeline_mode<synchronous>, transform_indices = @transform_1, window_bounds = array<i64: 4, 12, 128>}, {pipeline_mode = #tpu.pipeline_mode<synchronous>, transform_indices = @transform_2, window_bounds = array<i64: 1, 128>}, {pipeline_mode = #tpu.pipeline_mode<synchronous>, transform_indices = @transform_3, window_bounds = array<i64: 1, 128>}, {transform_indices = @transform_4, window_bounds = array<i64: 1, 512, 128>}]} {
    %c512_i32 = arith.constant 512 : i32
    %0 = arith.muli %arg1, %c512_i32 : i32
    %cst = arith.constant 0.000000e+00 : f32
    %1 = vector.broadcast %cst : f32 to vector<512x128xf32>
    %c0_i32 = arith.constant 0 : i32
    %2 = arith.addi %0, %c0_i32 : i32
    %c0 = arith.constant 0 : index
    %3 = arith.index_cast %2 : i32 to index
    %c0_0 = arith.constant 0 : index
    %4 = vector.load %arg2[%c0, %3, %c0_0] : memref<1x1054x12xf32, #tpu.memory_space<vmem>>, vector<1x512x12xf32>
    %5 = vector.shape_cast %4 : vector<1x512x12xf32> to vector<512x12xf32>
    %6 = arith.truncf %5 : vector<512x12xf32> to vector<512x12xbf16>
    %c0_1 = arith.constant 0 : index
    %c0_2 = arith.constant 0 : index
    %c0_3 = arith.constant 0 : index
    %7 = vector.load %arg3[%c0_1, %c0_2, %c0_3] : memref<4x12x128xbf16, #tpu.memory_space<vmem>>, vector<1x12x128xbf16>
    %8 = vector.shape_cast %7 : vector<1x12x128xbf16> to vector<12x128xbf16>
    %cst_4 = arith.constant dense<0.000000e+00> : vector<512x128xf32>
    %9 = tpu.matmul %6, %8, %cst_4 {dimension_numbers = #tpu.dot_dimension_numbers<[1], [0], [0], [1], [0, 0, 1, 1], [], []>} : vector<512x12xbf16>, vector<12x128xbf16>, vector<512x128xf32> -> vector<512x128xf32>
    %10 = arith.addf %1, %9 : vector<512x128xf32>
    %c1_i32 = arith.constant 1 : i32
    %11 = arith.addi %0, %c1_i32 : i32
    %c0_5 = arith.constant 0 : index
    %12 = arith.index_cast %11 : i32 to index
    %c0_6 = arith.constant 0 : index
    %13 = vector.load %arg2[%c0_5, %12, %c0_6] : memref<1x1054x12xf32, #tpu.memory_space<vmem>>, vector<1x512x12xf32>
    %14 = vector.shape_cast %13 : vector<1x512x12xf32> to vector<512x12xf32>
    %15 = arith.truncf %14 : vector<512x12xf32> to vector<512x12xbf16>
    %c1 = arith.constant 1 : index
    %c0_7 = arith.constant 0 : index
    %c0_8 = arith.constant 0 : index
    %16 = vector.load %arg3[%c1, %c0_7, %c0_8] : memref<4x12x128xbf16, #tpu.memory_space<vmem>>, vector<1x12x128xbf16>
    %17 = vector.shape_cast %16 : vector<1x12x128xbf16> to vector<12x128xbf16>
    %cst_9 = arith.constant dense<0.000000e+00> : vector<512x128xf32>
    %18 = tpu.matmul %15, %17, %cst_9 {dimension_numbers = #tpu.dot_dimension_numbers<[1], [0], [0], [1], [0, 0, 1, 1], [], []>} : vector<512x12xbf16>, vector<12x128xbf16>, vector<512x128xf32> -> vector<512x128xf32>
    %19 = arith.addf %10, %18 : vector<512x128xf32>
    %c29_i32 = arith.constant 29 : i32
    %20 = arith.addi %0, %c29_i32 : i32
    %c0_10 = arith.constant 0 : index
    %21 = arith.index_cast %20 : i32 to index
    %c0_11 = arith.constant 0 : index
    %22 = vector.load %arg2[%c0_10, %21, %c0_11] : memref<1x1054x12xf32, #tpu.memory_space<vmem>>, vector<1x512x12xf32>
    %23 = vector.shape_cast %22 : vector<1x512x12xf32> to vector<512x12xf32>
    %24 = arith.truncf %23 : vector<512x12xf32> to vector<512x12xbf16>
    %c2 = arith.constant 2 : index
    %c0_12 = arith.constant 0 : index
    %c0_13 = arith.constant 0 : index
    %25 = vector.load %arg3[%c2, %c0_12, %c0_13] : memref<4x12x128xbf16, #tpu.memory_space<vmem>>, vector<1x12x128xbf16>
    %26 = vector.shape_cast %25 : vector<1x12x128xbf16> to vector<12x128xbf16>
    %cst_14 = arith.constant dense<0.000000e+00> : vector<512x128xf32>
    %27 = tpu.matmul %24, %26, %cst_14 {dimension_numbers = #tpu.dot_dimension_numbers<[1], [0], [0], [1], [0, 0, 1, 1], [], []>} : vector<512x12xbf16>, vector<12x128xbf16>, vector<512x128xf32> -> vector<512x128xf32>
    %28 = arith.addf %19, %27 : vector<512x128xf32>
    %c30_i32 = arith.constant 30 : i32
    %29 = arith.addi %0, %c30_i32 : i32
    %c0_15 = arith.constant 0 : index
    %30 = arith.index_cast %29 : i32 to index
    %c0_16 = arith.constant 0 : index
    %31 = vector.load %arg2[%c0_15, %30, %c0_16] : memref<1x1054x12xf32, #tpu.memory_space<vmem>>, vector<1x512x12xf32>
    %32 = vector.shape_cast %31 : vector<1x512x12xf32> to vector<512x12xf32>
    %33 = arith.truncf %32 : vector<512x12xf32> to vector<512x12xbf16>
    %c3 = arith.constant 3 : index
    %c0_17 = arith.constant 0 : index
    %c0_18 = arith.constant 0 : index
    %34 = vector.load %arg3[%c3, %c0_17, %c0_18] : memref<4x12x128xbf16, #tpu.memory_space<vmem>>, vector<1x12x128xbf16>
    %35 = vector.shape_cast %34 : vector<1x12x128xbf16> to vector<12x128xbf16>
    %cst_19 = arith.constant dense<0.000000e+00> : vector<512x128xf32>
    %36 = tpu.matmul %33, %35, %cst_19 {dimension_numbers = #tpu.dot_dimension_numbers<[1], [0], [0], [1], [0, 0, 1, 1], [], []>} : vector<512x12xbf16>, vector<12x128xbf16>, vector<512x128xf32> -> vector<512x128xf32>
    %37 = arith.addf %28, %36 : vector<512x128xf32>
    %c0_20 = arith.constant 0 : index
    %c0_21 = arith.constant 0 : index
    %38 = vector.load %arg4[%c0_20, %c0_21] : memref<1x128xf32, #tpu.memory_space<vmem>>, vector<1x128xf32>
    %39 = vector.broadcast %38 : vector<1x128xf32> to vector<512x128xf32>
    %40 = arith.mulf %37, %39 : vector<512x128xf32>
    %c0_22 = arith.constant 0 : index
    %c0_23 = arith.constant 0 : index
    %41 = vector.load %arg5[%c0_22, %c0_23] : memref<1x128xf32, #tpu.memory_space<vmem>>, vector<1x128xf32>
    %42 = vector.broadcast %41 : vector<1x128xf32> to vector<512x128xf32>
    %43 = arith.addf %40, %42 : vector<512x128xf32>
    %cst_24 = arith.constant 0.000000e+00 : f32
    %44 = vector.broadcast %cst_24 : f32 to vector<512x128xf32>
    %45 = arith.maximumf %43, %44 : vector<512x128xf32>
    %46 = arith.truncf %45 : vector<512x128xf32> to vector<512x128xbf16>
    %c0_25 = arith.constant 0 : index
    %c0_26 = arith.constant 0 : index
    %c0_27 = arith.constant 0 : index
    %47 = vector.load %arg6[%c0_25, %c0_26, %c0_27] : memref<1x512x128xbf16, #tpu.memory_space<vmem>>, vector<1x512x128xbf16>
    %48 = vector.shape_cast %47 : vector<1x512x128xbf16> to vector<512x128xbf16>
    %49 = vector.shape_cast %46 : vector<512x128xbf16> to vector<1x512x128xbf16>
    tpu.vector_store %arg6[%c0_25, %c0_26, %c0_27], %49 {strides = array<i32>} : memref<1x512x128xbf16, #tpu.memory_space<vmem>>, vector<1x512x128xbf16>,
    return
  }
  func.func @transform_0(%arg0: i32, %arg1: i32) -> (i32, i32, i32) {
    %c0_i32 = arith.constant 0 : i32
    %c0_i32_0 = arith.constant 0 : i32
    %c0_i32_1 = arith.constant 0 : i32
    return %arg0, %c0_i32, %c0_i32_0 : i32, i32, i32
  }
  func.func @transform_1(%arg0: i32, %arg1: i32) -> (i32, i32, i32) {
    %c0_i32 = arith.constant 0 : i32
    %c0_i32_0 = arith.constant 0 : i32
    %c0_i32_1 = arith.constant 0 : i32
    %c0_i32_2 = arith.constant 0 : i32
    return %c0_i32, %c0_i32_0, %c0_i32_1 : i32, i32, i32
  }
  func.func @transform_2(%arg0: i32, %arg1: i32) -> (i32, i32) {
    %c0_i32 = arith.constant 0 : i32
    %c0_i32_0 = arith.constant 0 : i32
    %c0_i32_1 = arith.constant 0 : i32
    return %c0_i32, %c0_i32_0 : i32, i32
  }
  func.func @transform_3(%arg0: i32, %arg1: i32) -> (i32, i32) {
    %c0_i32 = arith.constant 0 : i32
    %c0_i32_0 = arith.constant 0 : i32
    %c0_i32_1 = arith.constant 0 : i32
    return %c0_i32, %c0_i32_0 : i32, i32
  }
  func.func @transform_4(%arg0: i32, %arg1: i32) -> (i32, i32, i32) {
    %c0_i32 = arith.constant 0 : i32
    %c0_i32_0 = arith.constant 0 : i32
    return %arg0, %arg1, %c0_i32 : i32, i32, i32
  }
}

</mosaic_0001>

<llo_original>
// kernel: tpu_custom_call.1
$region0: #{tpu_custom_call.1}
  #allocation0 [shape = 'u32[]', space=smem, size = 0x4, offset = 0x4, fixed_abs, tag = 'smem constant byte address 0x4 - core index']
  #allocation1 [shape = 'u32[144,128]{1,0:T(1,128)}', space=vmem, size = 0x12000, scoped, tag = 'internal scratch']
  %s0 = inlined_call_operand.vmem [shape: f32[2,1054,12], index: 0, kind: input, shape index: {}]
  %s1 = inlined_call_operand.vmem [shape: bf16[4,12,128], index: 1, kind: input, shape index: {}]
  %s2 = inlined_call_operand.vmem [shape: f32[1,128], index: 2, kind: input, shape index: {}]
  %s3 = inlined_call_operand.vmem [shape: f32[1,128], index: 3, kind: input, shape index: {}]
  %s4 = inlined_call_operand.hbm [shape: bf16[2,1024,128], index: 4, kind: output, shape index: {}]
  %s5 = sld [smem:[#allocation0]]
  $region49: #{tpu_custom_call.1} parent=0
    _
  %s7 = ssub.s32 1, %s5
  %s8 = scalar_select 0, %s7, %s5
  $region1: #{tpu_custom_call.1} parent=0
    #allocation2 [shape = 'u8[262144]{0}', space=vmem, size = 0x40000, scoped, tag = 'output window, operand 0']
    #allocation3 [shape = 's32[2]{0}', space=sflag, size = 0x8, scoped, tag = 'scoped memory for tpu_custom_call.1']
    %9 = vsyncpa [#allocation3], 0
    %s10 = scalar_lea.sflag [#allocation3], 1
    %11 = vsyncpa %s10, 0
    loop: start=0, step=1, limit=6
    $region2: #{tpu_custom_call.1} parent=1 // loop_pre_header
      _
    $region3: #{tpu_custom_call.1} parent=1 // loop_header
      %s13 = sphi 0, %s17
      %p14 = scmp.ge.s32.totalorder %s13, 6
      %s20 = sphi 0, %s32
      %s21 = sphi 0, %s28
      %s22 = sphi 0, %s20
      %s23 = sphi 0, %s21
      %s24 = sphi 0, %s22
      %s25 = sphi 0, %s23
      %s35 = sphi 0, %s37
      %s38 = sphi 0, %s35
      %s39 = sphi 0, %s38
      %s55 = sphi 0, %s39
      %s59 = sphi 0, %s59
      %s61 = sphi 0, %s59
      %s62 = sphi 0, %s61
      %s76 = sphi 0, %s62
      %s80 = sphi 0, %s80
      %s82 = sphi 0, %s80
      %s83 = sphi 0, %s82
      %s97 = sphi 0, %s83
      %s101 = sphi 0, %s101
      %s103 = sphi 0, %s101
      %s104 = sphi 0, %s103
      %s118 = sphi 0, %s104
      %s126 = sphi 0, %s128
      %s129 = sphi 0, %s126
      %s130 = sphi 0, %s129
      %s146 = sphi 0, %s130
    $region4: #{tpu_custom_call.1} parent=1 // loop_header_branch
      %16 = sbr.rel (%p14) target = $region8
    $region5: #{tpu_custom_call.1} parent=1 // loop_body
      %s18 = ssub.s32 %s13, 1
      %s19 = ssub.s32 %s13, 2
      %s26 = sadd.s32 1, %s21
      %p27 = scmp.ge.s32.totalorder %s26, 2
      %s28 = scalar_select %p27, 0, %s26
      %s29 = sadd.s32 1, %s20
      %s30 = scalar_select %p27, %s29, %s20
      %p31 = scmp.ge.s32.totalorder %s30, 2
      %s32 = scalar_select %p31, 0, %s30
      %s33 = ssub.s32 %s20, %s32
      %p34 = scmp.eq.s32.totalorder %s33, 0
      %s36 = sadd.s32 %s35, 1
      %s37 = scalar_select %p34, %s35, %s36
      %p40 = pneg %p34
      %p41 = scmp.eq.s32.totalorder %s13, 3
      %p42 = por %p40, %p41
      %p43 = scmp.ne.s32.totalorder %s35, %s38
      %p44 = scmp.eq.s32.totalorder %s13, 0
      %p45 = por %p43, %p44
      %p46 = scmp.ne.s32.totalorder %s35, %s38
      %p47 = scmp.eq.s32.totalorder %s18, 3
      %p48 = por %p46, %p47
      %p49 = scmp.ne.s32.totalorder %s38, %s39
      %p50 = scmp.eq.s32.totalorder %s18, 0
      %p51 = por %p49, %p50
      %p52 = scmp.ne.s32.totalorder %s38, %s39
      %p53 = scmp.eq.s32.totalorder %s19, 3
      %p54 = por %p52, %p53
      %p56 = scmp.ne.s32.totalorder %s39, %s55
      %p57 = scmp.eq.s32.totalorder %s19, 0
      %p58 = por %p56, %p57
      %s60 = sadd.s32 %s59, 1
      %p63 = scmp.eq.s32.totalorder %s13, 3
      %p64 = scmp.ne.s32.totalorder %s59, %s61
      %p65 = scmp.eq.s32.totalorder %s13, 0
      %p66 = por %p64, %p65
      %p67 = scmp.ne.s32.totalorder %s59, %s61
      %p68 = scmp.eq.s32.totalorder %s18, 3
      %p69 = por %p67, %p68
      %p70 = scmp.ne.s32.totalorder %s61, %s62
      %p71 = scmp.eq.s32.totalorder %s18, 0
      %p72 = por %p70, %p71
      %p73 = scmp.ne.s32.totalorder %s61, %s62
      %p74 = scmp.eq.s32.totalorder %s19, 3
      %p75 = por %p73, %p74
      %p77 = scmp.ne.s32.totalorder %s62, %s76
      %p78 = scmp.eq.s32.totalorder %s19, 0
      %p79 = por %p77, %p78
      %s81 = sadd.s32 %s80, 1
      %p84 = scmp.eq.s32.totalorder %s13, 3
      %p85 = scmp.ne.s32.totalorder %s80, %s82
      %p86 = scmp.eq.s32.totalorder %s13, 0
      %p87 = por %p85, %p86
      %p88 = scmp.ne.s32.totalorder %s80, %s82
      %p89 = scmp.eq.s32.totalorder %s18, 3
      %p90 = por %p88, %p89
      %p91 = scmp.ne.s32.totalorder %s82, %s83
      %p92 = scmp.eq.s32.totalorder %s18, 0
      %p93 = por %p91, %p92
      %p94 = scmp.ne.s32.totalorder %s82, %s83
      %p95 = scmp.eq.s32.totalorder %s19, 3
      %p96 = por %p94, %p95
      %p98 = scmp.ne.s32.totalorder %s83, %s97
      %p99 = scmp.eq.s32.totalorder %s19, 0
      %p100 = por %p98, %p99
      %s102 = sadd.s32 %s101, 1
      %p105 = scmp.eq.s32.totalorder %s13, 3
      %p106 = scmp.ne.s32.totalorder %s101, %s103
      %p107 = scmp.eq.s32.totalorder %s13, 0
      %p108 = por %p106, %p107
      %p109 = scmp.ne.s32.totalorder %s101, %s103
      %p110 = scmp.eq.s32.totalorder %s18, 3
      %p111 = por %p109, %p110
      %p112 = scmp.ne.s32.totalorder %s103, %s104
      %p113 = scmp.eq.s32.totalorder %s18, 0
      %p114 = por %p112, %p113
      %p115 = scmp.ne.s32.totalorder %s103, %s104
      %p116 = scmp.eq.s32.totalorder %s19, 3
      %p117 = por %p115, %p116
      %p119 = scmp.ne.s32.totalorder %s104, %s118
      %p120 = scmp.eq.s32.totalorder %s19, 0
      %p121 = por %p119, %p120
      %s122 = ssub.s32 %s20, %s32
      %s123 = ssub.s32 %s21, %s28
      %s124 = sor.u32 %s122, %s123
      %p125 = scmp.eq.s32.totalorder %s124, 0
      %s127 = sadd.s32 %s126, 1
      %s128 = scalar_select %p125, %s126, %s127
      %p131 = pneg %p125
      %p132 = scmp.eq.s32.totalorder %s13, 3
      %p133 = por %p131, %p132
      %p134 = scmp.ne.s32.totalorder %s126, %s129
      %p135 = scmp.eq.s32.totalorder %s13, 0
      %p136 = por %p134, %p135
      %p137 = scmp.ne.s32.totalorder %s126, %s129
      %p138 = scmp.eq.s32.totalorder %s18, 3
      %p139 = por %p137, %p138
      %p140 = scmp.ne.s32.totalorder %s129, %s130
      %p141 = scmp.eq.s32.totalorder %s18, 0
      %p142 = por %p140, %p141
      %p143 = scmp.ne.s32.totalorder %s129, %s130
      %p144 = scmp.eq.s32.totalorder %s19, 3
      %p145 = por %p143, %p144
      %p147 = scmp.ne.s32.totalorder %s130, %s146
      %p148 = scmp.eq.s32.totalorder %s19, 0
      %p149 = por %p147, %p148
      %p150 = scmp.le.s32.totalorder 1, %s13
      %p151 = scmp.lt.s32.totalorder %s13, 5
      %p152 = pnand %p150, %p151
      %p153 = pneg %p152
      // Predicated region
      $region9: #{tpu_custom_call.1} parent=5 // pred_check
        _
      $region10: #{tpu_custom_call.1} parent=5 // pred_check_branch
        %155 = sbr.rel (%p152) target = $region12
      $region11: #{tpu_custom_call.1} parent=5 // pred_region
        %s156 = ssub.s32 %s13, 1
        // Predicated region
        $region13: #{tpu_custom_call.1} parent=11 // pred_check
          %p157 = pneg %p72
        $region14: #{tpu_custom_call.1} parent=11 // pred_check_branch
          %159 = sbr.rel (%p157) target = $region16
        $region15: #{tpu_custom_call.1} parent=11 // pred_region
          _
        $region16: #{tpu_custom_call.1} parent=11 // pred_fallthru
          _
        // Predicated region
        $region17: #{tpu_custom_call.1} parent=11 // pred_check
          %p160 = pneg %p93
        $region18: #{tpu_custom_call.1} parent=11 // pred_check_branch
          %162 = sbr.rel (%p160) target = $region20
        $region19: #{tpu_custom_call.1} parent=11 // pred_region
          _
        $region20: #{tpu_custom_call.1} parent=11 // pred_fallthru
          _
        // Predicated region
        $region21: #{tpu_custom_call.1} parent=11 // pred_check
          %p163 = pneg %p114
        $region22: #{tpu_custom_call.1} parent=11 // pred_check_branch
          %165 = sbr.rel (%p163) target = $region24
        $region23: #{tpu_custom_call.1} parent=11 // pred_region
          _
        $region24: #{tpu_custom_call.1} parent=11 // pred_fallthru
          _
      $region12: #{tpu_custom_call.1} parent=5 // pred_fallthru
        _
      %p166 = scmp.lt.s32.totalorder %s13, 4
      // Predicated region
      $region25: #{tpu_custom_call.1} parent=5 // pred_check
        %p167 = pneg %p166
      $region26: #{tpu_custom_call.1} parent=5 // pred_check_branch
        %169 = sbr.rel (%p167) target = $region28
      $region27: #{tpu_custom_call.1} parent=5 // pred_region
        // Predicated region
        $region29: #{tpu_custom_call.1} parent=27 // pred_check
          %p170 = pneg %p45
        $region30: #{tpu_custom_call.1} parent=27 // pred_check_branch
          %172 = sbr.rel (%p170) target = $region32
        $region31: #{tpu_custom_call.1} parent=27 // pred_region
          %p173 = scmp.lt.s32.totalorder %s20, 1
          %s174 = scalar_select %p173, %s20, 1
          %s175 = smul.addr %s174, 132
          %s176 = smul.addr %s175, 8
          %s177 = scalar_lea.vmem %s0, %s176
        $region32: #{tpu_custom_call.1} parent=27 // pred_fallthru
          _
      $region28: #{tpu_custom_call.1} parent=5 // pred_fallthru
        _
      %p178 = scmp.le.s32.totalorder 1, %s13
      %p179 = scmp.lt.s32.totalorder %s13, 5
      %p180 = pnand %p178, %p179
      %p181 = pneg %p180
      // Predicated region
      $region33: #{tpu_custom_call.1} parent=5 // pred_check
        _
      $region34: #{tpu_custom_call.1} parent=5 // pred_check_branch
        %183 = sbr.rel (%p180) target = $region36
      $region35: #{tpu_custom_call.1} parent=5 // pred_region
        %s184 = ssub.s32 %s13, 1
        %p185 = scmp.lt.s32.totalorder %s22, 1
        %s186 = scalar_select %p185, %s22, 1
        %s187 = smul.addr %s186, 132
        %s188 = smul.addr %s187, 8
        %s189 = scalar_lea.vmem %s0, %s188
        %p190 = pneg %p51
        %p191 = pneg %p48
        %p192 = pneg %p72
        %p193 = pneg %p69
        %p194 = pneg %p93
        %p195 = pneg %p90
        %p196 = pneg %p114
        %p197 = pneg %p111
        %p198 = pneg %p142
        %p199 = pneg %p139
        %s200 = sand.u32 %s129, 1
        %s201 = scalar_lea.sflag [#allocation3], %s200
        %s202 = sand.u32 %s129, 1
        %s203 = smul.addr %s202, 256
        %s204 = scalar_lea.vmem [#allocation2], %s203
        %p205 = scmp.lt.s32.totalorder %s22, 1
        %s206 = scalar_select %p205, %s22, 1
        %s207 = smul.addr %s206, 132
        %s208 = smul.addr %s207, 8
        %s209 = scalar_lea.vmem %s0, %s208
        %s210 = smul.u32 64, %s23
        %s212 = smul.u32 %s23, 512
        %s213 = scalar_lea.vmem %s209, %s212
        %v214 = vld [vmem:[%s213] sm:$0xff]
        %v215 = vld [vmem:[%s213 + $0x8] sm:$0xff]
        %v216 = vld [vmem:[%s213 + $0x10] sm:$0xff]
        %v217 = vld [vmem:[%s213 + $0x18] sm:$0xff]
        %v218 = vld [vmem:[%s213 + $0x20] sm:$0xff]
        %v219 = vld [vmem:[%s213 + $0x28] sm:$0xff]
        %v220 = vld [vmem:[%s213 + $0x30] sm:$0xff]
        %v221 = vld [vmem:[%s213 + $0x38] sm:$0xff]
        %v222 = vld [vmem:[%s213 + $0x40] sm:$0xff]
        %v223 = vld [vmem:[%s213 + $0x48] sm:$0xff]
        %v224 = vld [vmem:[%s213 + $0x50] sm:$0xff]
        %v225 = vld [vmem:[%s213 + $0x58] sm:$0xff]
        %v226 = vld [vmem:[%s213 + $0x60] sm:$0xff]
        %v227 = vld [vmem:[%s213 + $0x68] sm:$0xff]
        %v228 = vld [vmem:[%s213 + $0x70] sm:$0xff]
        %v229 = vld [vmem:[%s213 + $0x78] sm:$0xff]
        %v230 = vld [vmem:[%s213 + $0x80] sm:$0xff]
        %v231 = vld [vmem:[%s213 + $0x88] sm:$0xff]
        %v232 = vld [vmem:[%s213 + $0x90] sm:$0xff]
        %v233 = vld [vmem:[%s213 + $0x98] sm:$0xff]
        %v234 = vld [vmem:[%s213 + $0xa0] sm:$0xff]
        %v235 = vld [vmem:[%s213 + $0xa8] sm:$0xff]
        %v236 = vld [vmem:[%s213 + $0xb0] sm:$0xff]
        %v237 = vld [vmem:[%s213 + $0xb8] sm:$0xff]
        %v238 = vld [vmem:[%s213 + $0xc0] sm:$0xff]
        %v239 = vld [vmem:[%s213 + $0xc8] sm:$0xff]
        %v240 = vld [vmem:[%s213 + $0xd0] sm:$0xff]
        %v241 = vld [vmem:[%s213 + $0xd8] sm:$0xff]
        %v242 = vld [vmem:[%s213 + $0xe0] sm:$0xff]
        %v243 = vld [vmem:[%s213 + $0xe8] sm:$0xff]
        %v244 = vld [vmem:[%s213 + $0xf0] sm:$0xff]
        %v245 = vld [vmem:[%s213 + $0xf8] sm:$0xff]
        %v246 = vld [vmem:[%s213 + $0x100] sm:$0xff]
        %v247 = vld [vmem:[%s213 + $0x108] sm:$0xff]
        %v248 = vld [vmem:[%s213 + $0x110] sm:$0xff]
        %v249 = vld [vmem:[%s213 + $0x118] sm:$0xff]
        %v250 = vld [vmem:[%s213 + $0x120] sm:$0xff]
        %v251 = vld [vmem:[%s213 + $0x128] sm:$0xff]
        %v252 = vld [vmem:[%s213 + $0x130] sm:$0xff]
        %v253 = vld [vmem:[%s213 + $0x138] sm:$0xff]
        %v254 = vld [vmem:[%s213 + $0x140] sm:$0xff]
        %v255 = vld [vmem:[%s213 + $0x148] sm:$0xff]
        %v256 = vld [vmem:[%s213 + $0x150] sm:$0xff]
        %v257 = vld [vmem:[%s213 + $0x158] sm:$0xff]
        %v258 = vld [vmem:[%s213 + $0x160] sm:$0xff]
        %v259 = vld [vmem:[%s213 + $0x168] sm:$0xff]
        %v260 = vld [vmem:[%s213 + $0x170] sm:$0xff]
        %v261 = vld [vmem:[%s213 + $0x178] sm:$0xff]
        %v262 = vld [vmem:[%s213 + $0x180] sm:$0xff]
        %v263 = vld [vmem:[%s213 + $0x188] sm:$0xff]
        %v264 = vld [vmem:[%s213 + $0x190] sm:$0xff]
        %v265 = vld [vmem:[%s213 + $0x198] sm:$0xff]
        %v266 = vld [vmem:[%s213 + $0x1a0] sm:$0xff]
        %v267 = vld [vmem:[%s213 + $0x1a8] sm:$0xff]
        %v268 = vld [vmem:[%s213 + $0x1b0] sm:$0xff]
        %v269 = vld [vmem:[%s213 + $0x1b8] sm:$0xff]
        %v270 = vld [vmem:[%s213 + $0x1c0] sm:$0xff]
        %v271 = vld [vmem:[%s213 + $0x1c8] sm:$0xff]
        %v272 = vld [vmem:[%s213 + $0x1d0] sm:$0xff]
        %v273 = vld [vmem:[%s213 + $0x1d8] sm:$0xff]
        %v274 = vld [vmem:[%s213 + $0x1e0] sm:$0xff]
        %v275 = vld [vmem:[%s213 + $0x1e8] sm:$0xff]
        %v276 = vld [vmem:[%s213 + $0x1f0] sm:$0xff]
        %v277 = vld [vmem:[%s213 + $0x1f8] sm:$0xff]
        %v278 = vpack.c.bf16 %v215, %v214
        %v279 = vpack.c.bf16 %v217, %v216
        %v280 = vpack.c.bf16 %v219, %v218
        %v281 = vpack.c.bf16 %v221, %v220
        %v282 = vpack.c.bf16 %v223, %v222
        %v283 = vpack.c.bf16 %v225, %v224
        %v284 = vpack.c.bf16 %v227, %v226
        %v285 = vpack.c.bf16 %v229, %v228
        %v286 = vpack.c.bf16 %v231, %v230
        %v287 = vpack.c.bf16 %v233, %v232
        %v288 = vpack.c.bf16 %v235, %v234
        %v289 = vpack.c.bf16 %v237, %v236
        %v290 = vpack.c.bf16 %v239, %v238
        %v291 = vpack.c.bf16 %v241, %v240
        %v292 = vpack.c.bf16 %v243, %v242
        %v293 = vpack.c.bf16 %v245, %v244
        %v294 = vpack.c.bf16 %v247, %v246
        %v295 = vpack.c.bf16 %v249, %v248
        %v296 = vpack.c.bf16 %v251, %v250
        %v297 = vpack.c.bf16 %v253, %v252
        %v298 = vpack.c.bf16 %v255, %v254
        %v299 = vpack.c.bf16 %v257, %v256
        %v300 = vpack.c.bf16 %v259, %v258
        %v301 = vpack.c.bf16 %v261, %v260
        %v302 = vpack.c.bf16 %v263, %v262
        %v303 = vpack.c.bf16 %v265, %v264
        %v304 = vpack.c.bf16 %v267, %v266
        %v305 = vpack.c.bf16 %v269, %v268
        %v306 = vpack.c.bf16 %v271, %v270
        %v307 = vpack.c.bf16 %v273, %v272
        %v308 = vpack.c.bf16 %v275, %v274
        %v309 = vpack.c.bf16 %v277, %v276
        %v310 = vld [vmem:[%s1] sm:$0xf]
        %v311 = vld [vmem:[%s1 + $0x4] sm:$0x3]
        %s312 = sadd.s32 %s212, 1
        %s313 = scalar_lea.vmem %s209, %s312
        %v314 = vld [vmem:[%s313] sm:$0xff]
        %v315 = vld [vmem:[%s313 + $0x8] sm:$0xff]
        %v316 = vld [vmem:[%s313 + $0x10] sm:$0xff]
        %v317 = vld [vmem:[%s313 + $0x18] sm:$0xff]
        %v318 = vld [vmem:[%s313 + $0x20] sm:$0xff]
        %v319 = vld [vmem:[%s313 + $0x28] sm:$0xff]
        %v320 = vld [vmem:[%s313 + $0x30] sm:$0xff]
        %v321 = vld [vmem:[%s313 + $0x38] sm:$0xff]
        %v322 = vld [vmem:[%s313 + $0x40] sm:$0xff]
        %v323 = vld [vmem:[%s313 + $0x48] sm:$0xff]
        %v324 = vld [vmem:[%s313 + $0x50] sm:$0xff]
        %v325 = vld [vmem:[%s313 + $0x58] sm:$0xff]
        %v326 = vld [vmem:[%s313 + $0x60] sm:$0xff]
        %v327 = vld [vmem:[%s313 + $0x68] sm:$0xff]
        %v328 = vld [vmem:[%s313 + $0x70] sm:$0xff]
        %v329 = vld [vmem:[%s313 + $0x78] sm:$0xff]
        %v330 = vld [vmem:[%s313 + $0x80] sm:$0xff]
        %v331 = vld [vmem:[%s313 + $0x88] sm:$0xff]
        %v332 = vld [vmem:[%s313 + $0x90] sm:$0xff]
        %v333 = vld [vmem:[%s313 + $0x98] sm:$0xff]
        %v334 = vld [vmem:[%s313 + $0xa0] sm:$0xff]
        %v335 = vld [vmem:[%s313 + $0xa8] sm:$0xff]
        %v336 = vld [vmem:[%s313 + $0xb0] sm:$0xff]
        %v337 = vld [vmem:[%s313 + $0xb8] sm:$0xff]
        %v338 = vld [vmem:[%s313 + $0xc0] sm:$0xff]
        %v339 = vld [vmem:[%s313 + $0xc8] sm:$0xff]
        %v340 = vld [vmem:[%s313 + $0xd0] sm:$0xff]
        %v341 = vld [vmem:[%s313 + $0xd8] sm:$0xff]
        %v342 = vld [vmem:[%s313 + $0xe0] sm:$0xff]
        %v343 = vld [vmem:[%s313 + $0xe8] sm:$0xff]
        %v344 = vld [vmem:[%s313 + $0xf0] sm:$0xff]
        %v345 = vld [vmem:[%s313 + $0xf8] sm:$0xff]
        %v346 = vld [vmem:[%s313 + $0x100] sm:$0xff]
        %v347 = vld [vmem:[%s313 + $0x108] sm:$0xff]
        %v348 = vld [vmem:[%s313 + $0x110] sm:$0xff]
        %v349 = vld [vmem:[%s313 + $0x118] sm:$0xff]
        %v350 = vld [vmem:[%s313 + $0x120] sm:$0xff]
        %v351 = vld [vmem:[%s313 + $0x128] sm:$0xff]
        %v352 = vld [vmem:[%s313 + $0x130] sm:$0xff]
        %v353 = vld [vmem:[%s313 + $0x138] sm:$0xff]
        %v354 = vld [vmem:[%s313 + $0x140] sm:$0xff]
        %v355 = vld [vmem:[%s313 + $0x148] sm:$0xff]
        %v356 = vld [vmem:[%s313 + $0x150] sm:$0xff]
        %v357 = vld [vmem:[%s313 + $0x158] sm:$0xff]
        %v358 = vld [vmem:[%s313 + $0x160] sm:$0xff]
        %v359 = vld [vmem:[%s313 + $0x168] sm:$0xff]
        %v360 = vld [vmem:[%s313 + $0x170] sm:$0xff]
        %v361 = vld [vmem:[%s313 + $0x178] sm:$0xff]
        %v362 = vld [vmem:[%s313 + $0x180] sm:$0xff]
        %v363 = vld [vmem:[%s313 + $0x188] sm:$0xff]
        %v364 = vld [vmem:[%s313 + $0x190] sm:$0xff]
        %v365 = vld [vmem:[%s313 + $0x198] sm:$0xff]
        %v366 = vld [vmem:[%s313 + $0x1a0] sm:$0xff]
        %v367 = vld [vmem:[%s313 + $0x1a8] sm:$0xff]
        %v368 = vld [vmem:[%s313 + $0x1b0] sm:$0xff]
        %v369 = vld [vmem:[%s313 + $0x1b8] sm:$0xff]
        %v370 = vld [vmem:[%s313 + $0x1c0] sm:$0xff]
        %v371 = vld [vmem:[%s313 + $0x1c8] sm:$0xff]
        %v372 = vld [vmem:[%s313 + $0x1d0] sm:$0xff]
        %v373 = vld [vmem:[%s313 + $0x1d8] sm:$0xff]
        %v374 = vld [vmem:[%s313 + $0x1e0] sm:$0xff]
        %v375 = vld [vmem:[%s313 + $0x1e8] sm:$0xff]
        %v376 = vld [vmem:[%s313 + $0x1f0] sm:$0xff]
        %v377 = vld [vmem:[%s313 + $0x1f8] sm:$0xff]
        %v378 = vpack.c.bf16 %v315, %v314
        %v379 = vpack.c.bf16 %v317, %v316
        %v380 = vpack.c.bf16 %v319, %v318
        %v381 = vpack.c.bf16 %v321, %v320
        %v382 = vpack.c.bf16 %v323, %v322
        %v383 = vpack.c.bf16 %v325, %v324
        %v384 = vpack.c.bf16 %v327, %v326
        %v385 = vpack.c.bf16 %v329, %v328
        %v386 = vpack.c.bf16 %v331, %v330
        %v387 = vpack.c.bf16 %v333, %v332
        %v388 = vpack.c.bf16 %v335, %v334
        %v389 = vpack.c.bf16 %v337, %v336
        %v390 = vpack.c.bf16 %v339, %v338
        %v391 = vpack.c.bf16 %v341, %v340
        %v392 = vpack.c.bf16 %v343, %v342
        %v393 = vpack.c.bf16 %v345, %v344
        %v394 = vpack.c.bf16 %v347, %v346
        %v395 = vpack.c.bf16 %v349, %v348
        %v396 = vpack.c.bf16 %v351, %v350
        %v397 = vpack.c.bf16 %v353, %v352
        %v398 = vpack.c.bf16 %v355, %v354
        %v399 = vpack.c.bf16 %v357, %v356
        %v400 = vpack.c.bf16 %v359, %v358
        %v401 = vpack.c.bf16 %v361, %v360
        %v402 = vpack.c.bf16 %v363, %v362
        %v403 = vpack.c.bf16 %v365, %v364
        %v404 = vpack.c.bf16 %v367, %v366
        %v405 = vpack.c.bf16 %v369, %v368
        %v406 = vpack.c.bf16 %v371, %v370
        %v407 = vpack.c.bf16 %v373, %v372
        %v408 = vpack.c.bf16 %v375, %v374
        %v409 = vpack.c.bf16 %v377, %v376
        %s410 = scalar_lea.vmem %s1, 8
        %v411 = vld [vmem:[%s410] sm:$0xf]
        %v412 = vld [vmem:[%s410 + $0x4] sm:$0x3]
        %v415 = vunpack.c.l.b16 %v411
        %v416 = vunpack.c.l.b16 %v412
        %v417 = vpack.c.b16 %v416, %v415
        %vm418 = vcmask 97280
        %v420 = vsel %vm418, %v378, 0
        %v423 = vsel %vm418, %v379, 0
        %v426 = vsel %vm418, %v380, 0
        %v429 = vsel %vm418, %v381, 0
        %v432 = vsel %vm418, %v382, 0
        %v435 = vsel %vm418, %v383, 0
        %v438 = vsel %vm418, %v384, 0
        %v441 = vsel %vm418, %v385, 0
        %v444 = vsel %vm418, %v386, 0
        %v447 = vsel %vm418, %v387, 0
        %v450 = vsel %vm418, %v388, 0
        %v453 = vsel %vm418, %v389, 0
        %v456 = vsel %vm418, %v390, 0
        %v459 = vsel %vm418, %v391, 0
        %v462 = vsel %vm418, %v392, 0
        %v465 = vsel %vm418, %v393, 0
        %v468 = vsel %vm418, %v394, 0
        %v471 = vsel %vm418, %v395, 0
        %v474 = vsel %vm418, %v396, 0
        %v477 = vsel %vm418, %v397, 0
        %v480 = vsel %vm418, %v398, 0
        %v483 = vsel %vm418, %v399, 0
        %v486 = vsel %vm418, %v400, 0
        %v489 = vsel %vm418, %v401, 0
        %v492 = vsel %vm418, %v402, 0
        %v495 = vsel %vm418, %v403, 0
        %v498 = vsel %vm418, %v404, 0
        %v501 = vsel %vm418, %v405, 0
        %v504 = vsel %vm418, %v406, 0
        %v507 = vsel %vm418, %v407, 0
        %v510 = vsel %vm418, %v408, 0
        %v513 = vsel %vm418, %v409, 0
        %vm515 = vcmask 1045504
        %v517 = vsel %vm515, %v417, 0
        %519 = vmatprep.subr.bf16.mxu0 0
        %520 = vmatpush1.bf16.msra.mxu0 0
        %521 = vmatprep.subr.bf16.mxu0 0
        %522 = vmatpush1.bf16.msra.mxu0 0
        %523 = vmatprep.subr.bf16.mxu0 0
        %524 = vmatpush1.bf16.msra.mxu0 0
        %525 = vmatprep.subr.bf16.mxu0 0
        %526 = vmatpush1.bf16.msra.mxu0 0
        %527 = vmatprep.subr.bf16.mxu0 0
        %528 = vmatpush1.bf16.msra.mxu0 0
        %529 = vmatprep.subr.bf16.mxu0 0
        %530 = vmatpush1.bf16.msra.mxu0 0
        %531 = vmatprep.subr.bf16.mxu0 0
        %532 = vmatpush1.bf16.msra.mxu0 0
        %533 = vmatprep.subr.bf16.mxu0 0
        %534 = vmatpush1.bf16.msra.mxu0 %v517
        %535 = vmatprep.subr.bf16.mxu0 0
        %536 = vmatpush2.bf16.msra.mxu0 0
        %537 = vmatprep.subr.bf16.mxu0 0
        %538 = vmatpush2.bf16.msra.mxu0 0
        %539 = vmatprep.subr.bf16.mxu0 0
        %540 = vmatpush2.bf16.msra.mxu0 0
        %541 = vmatprep.subr.bf16.mxu0 0
        %542 = vmatpush2.bf16.msra.mxu0 0
        %543 = vmatprep.subr.bf16.mxu0 0
        %544 = vmatpush2.bf16.msra.mxu0 0
        %545 = vmatprep.subr.bf16.mxu0 0
        %546 = vmatpush2.bf16.msra.mxu0 0
        %547 = vmatprep.subr.bf16.mxu0 0
        %548 = vmatpush2.bf16.msra.mxu0 0
        %549 = vmatprep.subr.bf16.mxu0 0
        %550 = vmatpush2.bf16.msra.mxu0 0
        %551 = vmatprep.mubr.bf16.mxu0 0
        %552 = vmatmul.mubr.bf16.gmra.mxu0 %v420
        %v553 = vpop.f32.mrf.mxu0
        %v554 = vadd.f32 0.0, %v553
        %v555 = vpop.f32.mrf.mxu0
        %v556 = vpop.f32.mrf.mxu0
        %v557 = vadd.f32 0.0, %v556
        %v558 = vpop.f32.mrf.mxu0
        %559 = vmatprep.mubr.bf16.mxu0 0
        %560 = vmatmul.mubr.bf16.gmra.mxu0 %v423
        %v561 = vpop.f32.mrf.mxu0
        %v562 = vadd.f32 0.0, %v561
        %v563 = vpop.f32.mrf.mxu0
        %v564 = vpop.f32.mrf.mxu0
        %v565 = vadd.f32 0.0, %v564
        %v566 = vpop.f32.mrf.mxu0
        %567 = vmatprep.mubr.bf16.mxu0 0
        %568 = vmatmul.mubr.bf16.gmra.mxu0 %v426
        %v569 = vpop.f32.mrf.mxu0
        %v570 = vadd.f32 0.0, %v569
        %v571 = vpop.f32.mrf.mxu0
        %v572 = vpop.f32.mrf.mxu0
        %v573 = vadd.f32 0.0, %v572
        %v574 = vpop.f32.mrf.mxu0
        %575 = vmatprep.mubr.bf16.mxu0 0
        %576 = vmatmul.mubr.bf16.gmra.mxu0 %v429
        %v577 = vpop.f32.mrf.mxu0
        %v578 = vadd.f32 0.0, %v577
        %v579 = vpop.f32.mrf.mxu0
        %v580 = vpop.f32.mrf.mxu0
        %v581 = vadd.f32 0.0, %v580
        %v582 = vpop.f32.mrf.mxu0
        %583 = vmatprep.mubr.bf16.mxu0 0
        %584 = vmatmul.mubr.bf16.gmra.mxu0 %v432
        %v585 = vpop.f32.mrf.mxu0
        %v586 = vadd.f32 0.0, %v585
        %v587 = vpop.f32.mrf.mxu0
        %v588 = vpop.f32.mrf.mxu0
        %v589 = vadd.f32 0.0, %v588
        %v590 = vpop.f32.mrf.mxu0
        %591 = vmatprep.mubr.bf16.mxu0 0
        %592 = vmatmul.mubr.bf16.gmra.mxu0 %v435
        %v593 = vpop.f32.mrf.mxu0
        %v594 = vadd.f32 0.0, %v593
        %v595 = vpop.f32.mrf.mxu0
        %v596 = vpop.f32.mrf.mxu0
        %v597 = vadd.f32 0.0, %v596
        %v598 = vpop.f32.mrf.mxu0
        %599 = vmatprep.mubr.bf16.mxu0 0
        %600 = vmatmul.mubr.bf16.gmra.mxu0 %v438
        %v601 = vpop.f32.mrf.mxu0
        %v602 = vadd.f32 0.0, %v601
        %v603 = vpop.f32.mrf.mxu0
        %v604 = vpop.f32.mrf.mxu0
        %v605 = vadd.f32 0.0, %v604
        %v606 = vpop.f32.mrf.mxu0
        %607 = vmatprep.mubr.bf16.mxu0 0
        %608 = vmatmul.mubr.bf16.gmra.mxu0 %v441
        %v609 = vpop.f32.mrf.mxu0
        %v610 = vadd.f32 0.0, %v609
        %v611 = vpop.f32.mrf.mxu0
        %v612 = vpop.f32.mrf.mxu0
        %v613 = vadd.f32 0.0, %v612
        %v614 = vpop.f32.mrf.mxu0
        %615 = vmatprep.mubr.bf16.mxu0 0
        %616 = vmatmul.mubr.bf16.gmra.mxu0 %v444
        %v617 = vpop.f32.mrf.mxu0
        %v618 = vadd.f32 0.0, %v617
        %v619 = vpop.f32.mrf.mxu0
        %v620 = vpop.f32.mrf.mxu0
        %v621 = vadd.f32 0.0, %v620
        %v622 = vpop.f32.mrf.mxu0
        %623 = vmatprep.mubr.bf16.mxu0 0
        %624 = vmatmul.mubr.bf16.gmra.mxu0 %v447
        %v625 = vpop.f32.mrf.mxu0
        %v626 = vadd.f32 0.0, %v625
        %v627 = vpop.f32.mrf.mxu0
        %v628 = vpop.f32.mrf.mxu0
        %v629 = vadd.f32 0.0, %v628
        %v630 = vpop.f32.mrf.mxu0
        %631 = vmatprep.mubr.bf16.mxu0 0
        %632 = vmatmul.mubr.bf16.gmra.mxu0 %v450
        %v633 = vpop.f32.mrf.mxu0
        %v634 = vadd.f32 0.0, %v633
        %v635 = vpop.f32.mrf.mxu0
        %v636 = vpop.f32.mrf.mxu0
        %v637 = vadd.f32 0.0, %v636
        %v638 = vpop.f32.mrf.mxu0
        %639 = vmatprep.mubr.bf16.mxu0 0
        %640 = vmatmul.mubr.bf16.gmra.mxu0 %v453
        %v641 = vpop.f32.mrf.mxu0
        %v642 = vadd.f32 0.0, %v641
        %v643 = vpop.f32.mrf.mxu0
        %v644 = vpop.f32.mrf.mxu0
        %v645 = vadd.f32 0.0, %v644
        %v646 = vpop.f32.mrf.mxu0
        %647 = vmatprep.mubr.bf16.mxu0 0
        %648 = vmatmul.mubr.bf16.gmra.mxu0 %v456
        %v649 = vpop.f32.mrf.mxu0
        %v650 = vadd.f32 0.0, %v649
        %v651 = vpop.f32.mrf.mxu0
        %v652 = vpop.f32.mrf.mxu0
        %v653 = vadd.f32 0.0, %v652
        %v654 = vpop.f32.mrf.mxu0
        %655 = vmatprep.mubr.bf16.mxu0 0
        %656 = vmatmul.mubr.bf16.gmra.mxu0 %v459
        %v657 = vpop.f32.mrf.mxu0
        %v658 = vadd.f32 0.0, %v657
        %v659 = vpop.f32.mrf.mxu0
        %v660 = vpop.f32.mrf.mxu0
        %v661 = vadd.f32 0.0, %v660
        %v662 = vpop.f32.mrf.mxu0
        %663 = vmatprep.mubr.bf16.mxu0 0
        %664 = vmatmul.mubr.bf16.gmra.mxu0 %v462
        %v665 = vpop.f32.mrf.mxu0
        %v666 = vadd.f32 0.0, %v665
        %v667 = vpop.f32.mrf.mxu0
        %v668 = vpop.f32.mrf.mxu0
        %v669 = vadd.f32 0.0, %v668
        %v670 = vpop.f32.mrf.mxu0
        %671 = vmatprep.mubr.bf16.mxu0 0
        %672 = vmatmul.mubr.bf16.gmra.mxu0 %v465
        %v673 = vpop.f32.mrf.mxu0
        %v674 = vadd.f32 0.0, %v673
        %v675 = vpop.f32.mrf.mxu0
        %v676 = vpop.f32.mrf.mxu0
        %v677 = vadd.f32 0.0, %v676
        %v678 = vpop.f32.mrf.mxu0
        %679 = vmatprep.mubr.bf16.mxu0 0
        %680 = vmatmul.mubr.bf16.gmra.mxu0 %v468
        %v681 = vpop.f32.mrf.mxu0
        %v682 = vadd.f32 0.0, %v681
        %v683 = vpop.f32.mrf.mxu0
        %v684 = vpop.f32.mrf.mxu0
        %v685 = vadd.f32 0.0, %v684
        %v686 = vpop.f32.mrf.mxu0
        %687 = vmatprep.mubr.bf16.mxu0 0
        %688 = vmatmul.mubr.bf16.gmra.mxu0 %v471
        %v689 = vpop.f32.mrf.mxu0
        %v690 = vadd.f32 0.0, %v689
        %v691 = vpop.f32.mrf.mxu0
        %v692 = vpop.f32.mrf.mxu0
        %v693 = vadd.f32 0.0, %v692
        %v694 = vpop.f32.mrf.mxu0
        %695 = vmatprep.mubr.bf16.mxu0 0
        %696 = vmatmul.mubr.bf16.gmra.mxu0 %v474
        %v697 = vpop.f32.mrf.mxu0
        %v698 = vadd.f32 0.0, %v697
        %v699 = vpop.f32.mrf.mxu0
        %v700 = vpop.f32.mrf.mxu0
        %v701 = vadd.f32 0.0, %v700
        %v702 = vpop.f32.mrf.mxu0
        %703 = vmatprep.mubr.bf16.mxu0 0
        %704 = vmatmul.mubr.bf16.gmra.mxu0 %v477
        %v705 = vpop.f32.mrf.mxu0
        %v706 = vadd.f32 0.0, %v705
        %v707 = vpop.f32.mrf.mxu0
        %v708 = vpop.f32.mrf.mxu0
        %v709 = vadd.f32 0.0, %v708
        %v710 = vpop.f32.mrf.mxu0
        %711 = vmatprep.mubr.bf16.mxu0 0
        %712 = vmatmul.mubr.bf16.gmra.mxu0 %v480
        %v713 = vpop.f32.mrf.mxu0
        %v714 = vadd.f32 0.0, %v713
        %v715 = vpop.f32.mrf.mxu0
        %v716 = vpop.f32.mrf.mxu0
        %v717 = vadd.f32 0.0, %v716
        %v718 = vpop.f32.mrf.mxu0
        %719 = vmatprep.mubr.bf16.mxu0 0
        %720 = vmatmul.mubr.bf16.gmra.mxu0 %v483
        %v721 = vpop.f32.mrf.mxu0
        %v722 = vadd.f32 0.0, %v721
        %v723 = vpop.f32.mrf.mxu0
        %v724 = vpop.f32.mrf.mxu0
        %v725 = vadd.f32 0.0, %v724
        %v726 = vpop.f32.mrf.mxu0
        %727 = vmatprep.mubr.bf16.mxu0 0
        %728 = vmatmul.mubr.bf16.gmra.mxu0 %v486
        %v729 = vpop.f32.mrf.mxu0
        %v730 = vadd.f32 0.0, %v729
        %v731 = vpop.f32.mrf.mxu0
        %v732 = vpop.f32.mrf.mxu0
        %v733 = vadd.f32 0.0, %v732
        %v734 = vpop.f32.mrf.mxu0
        %735 = vmatprep.mubr.bf16.mxu0 0
        %736 = vmatmul.mubr.bf16.gmra.mxu0 %v489
        %v737 = vpop.f32.mrf.mxu0
        %v738 = vadd.f32 0.0, %v737
        %v739 = vpop.f32.mrf.mxu0
        %v740 = vpop.f32.mrf.mxu0
        %v741 = vadd.f32 0.0, %v740
        %v742 = vpop.f32.mrf.mxu0
        %743 = vmatprep.mubr.bf16.mxu0 0
        %744 = vmatmul.mubr.bf16.gmra.mxu0 %v492
        %v745 = vpop.f32.mrf.mxu0
        %v746 = vadd.f32 0.0, %v745
        %v747 = vpop.f32.mrf.mxu0
        %v748 = vpop.f32.mrf.mxu0
        %v749 = vadd.f32 0.0, %v748
        %v750 = vpop.f32.mrf.mxu0
        %751 = vmatprep.mubr.bf16.mxu0 0
        %752 = vmatmul.mubr.bf16.gmra.mxu0 %v495
        %v753 = vpop.f32.mrf.mxu0
        %v754 = vadd.f32 0.0, %v753
        %v755 = vpop.f32.mrf.mxu0
        %v756 = vpop.f32.mrf.mxu0
        %v757 = vadd.f32 0.0, %v756
        %v758 = vpop.f32.mrf.mxu0
        %759 = vmatprep.mubr.bf16.mxu0 0
        %760 = vmatmul.mubr.bf16.gmra.mxu0 %v498
        %v761 = vpop.f32.mrf.mxu0
        %v762 = vadd.f32 0.0, %v761
        %v763 = vpop.f32.mrf.mxu0
        %v764 = vpop.f32.mrf.mxu0
        %v765 = vadd.f32 0.0, %v764
        %v766 = vpop.f32.mrf.mxu0
        %767 = vmatprep.mubr.bf16.mxu0 0
        %768 = vmatmul.mubr.bf16.gmra.mxu0 %v501
        %v769 = vpop.f32.mrf.mxu0
        %v770 = vadd.f32 0.0, %v769
        %v771 = vpop.f32.mrf.mxu0
        %v772 = vpop.f32.mrf.mxu0
        %v773 = vadd.f32 0.0, %v772
        %v774 = vpop.f32.mrf.mxu0
        %775 = vmatprep.mubr.bf16.mxu0 0
        %776 = vmatmul.mubr.bf16.gmra.mxu0 %v504
        %v777 = vpop.f32.mrf.mxu0
        %v778 = vadd.f32 0.0, %v777
        %v779 = vpop.f32.mrf.mxu0
        %v780 = vpop.f32.mrf.mxu0
        %v781 = vadd.f32 0.0, %v780
        %v782 = vpop.f32.mrf.mxu0
        %783 = vmatprep.mubr.bf16.mxu0 0
        %784 = vmatmul.mubr.bf16.gmra.mxu0 %v507
        %v785 = vpop.f32.mrf.mxu0
        %v786 = vadd.f32 0.0, %v785
        %v787 = vpop.f32.mrf.mxu0
        %v788 = vpop.f32.mrf.mxu0
        %v789 = vadd.f32 0.0, %v788
        %v790 = vpop.f32.mrf.mxu0
        %791 = vmatprep.mubr.bf16.mxu0 0
        %792 = vmatmul.mubr.bf16.gmra.mxu0 %v510
        %v793 = vpop.f32.mrf.mxu0
        %v794 = vadd.f32 0.0, %v793
        %v795 = vpop.f32.mrf.mxu0
        %v796 = vpop.f32.mrf.mxu0
        %v797 = vadd.f32 0.0, %v796
        %v798 = vpop.f32.mrf.mxu0
        %799 = vmatprep.mubr.bf16.mxu0 0
        %800 = vmatmul.mubr.bf16.gmra.mxu0 %v513
        %v801 = vpop.f32.mrf.mxu0
        %v802 = vadd.f32 0.0, %v801
        %v803 = vpop.f32.mrf.mxu0
        %v804 = vpop.f32.mrf.mxu0
        %v805 = vadd.f32 0.0, %v804
        %v806 = vpop.f32.mrf.mxu0
        %807 = vdwg.mxu0
        %v810 = vunpack.c.l.b16 %v310
        %v811 = vunpack.c.l.b16 %v311
        %v812 = vpack.c.b16 %v811, %v810
        %v814 = vsel %vm418, %v278, 0
        %v817 = vsel %vm418, %v279, 0
        %v820 = vsel %vm418, %v280, 0
        %v823 = vsel %vm418, %v281, 0
        %v826 = vsel %vm418, %v282, 0
        %v829 = vsel %vm418, %v283, 0
        %v832 = vsel %vm418, %v284, 0
        %v835 = vsel %vm418, %v285, 0
        %v838 = vsel %vm418, %v286, 0
        %v841 = vsel %vm418, %v287, 0
        %v844 = vsel %vm418, %v288, 0
        %v847 = vsel %vm418, %v289, 0
        %v850 = vsel %vm418, %v290, 0
        %v853 = vsel %vm418, %v291, 0
        %v856 = vsel %vm418, %v292, 0
        %v859 = vsel %vm418, %v293, 0
        %v862 = vsel %vm418, %v294, 0
        %v865 = vsel %vm418, %v295, 0
        %v868 = vsel %vm418, %v296, 0
        %v871 = vsel %vm418, %v297, 0
        %v874 = vsel %vm418, %v298, 0
        %v877 = vsel %vm418, %v299, 0
        %v880 = vsel %vm418, %v300, 0
        %v883 = vsel %vm418, %v301, 0
        %v886 = vsel %vm418, %v302, 0
        %v889 = vsel %vm418, %v303, 0
        %v892 = vsel %vm418, %v304, 0
        %v895 = vsel %vm418, %v305, 0
        %v898 = vsel %vm418, %v306, 0
        %v901 = vsel %vm418, %v307, 0
        %v904 = vsel %vm418, %v308, 0
        %v907 = vsel %vm418, %v309, 0
        %v910 = vsel %vm515, %v812, 0
        %912 = vmatprep.subr.bf16.mxu0 0
        %913 = vmatpush1.bf16.msra.mxu0 0
        %914 = vmatprep.subr.bf16.mxu0 0
        %915 = vmatpush1.bf16.msra.mxu0 0
        %916 = vmatprep.subr.bf16.mxu0 0
        %917 = vmatpush1.bf16.msra.mxu0 0
        %918 = vmatprep.subr.bf16.mxu0 0
        %919 = vmatpush1.bf16.msra.mxu0 0
        %920 = vmatprep.subr.bf16.mxu0 0
        %921 = vmatpush1.bf16.msra.mxu0 0
        %922 = vmatprep.subr.bf16.mxu0 0
        %923 = vmatpush1.bf16.msra.mxu0 0
        %924 = vmatprep.subr.bf16.mxu0 0
        %925 = vmatpush1.bf16.msra.mxu0 0
        %926 = vmatprep.subr.bf16.mxu0 0
        %927 = vmatpush1.bf16.msra.mxu0 %v910
        %928 = vmatprep.subr.bf16.mxu0 0
        %929 = vmatpush2.bf16.msra.mxu0 0
        %930 = vmatprep.subr.bf16.mxu0 0
        %931 = vmatpush2.bf16.msra.mxu0 0
        %932 = vmatprep.subr.bf16.mxu0 0
        %933 = vmatpush2.bf16.msra.mxu0 0
        %934 = vmatprep.subr.bf16.mxu0 0
        %935 = vmatpush2.bf16.msra.mxu0 0
        %936 = vmatprep.subr.bf16.mxu0 0
        %937 = vmatpush2.bf16.msra.mxu0 0
        %938 = vmatprep.subr.bf16.mxu0 0
        %939 = vmatpush2.bf16.msra.mxu0 0
        %940 = vmatprep.subr.bf16.mxu0 0
        %941 = vmatpush2.bf16.msra.mxu0 0
        %942 = vmatprep.subr.bf16.mxu0 0
        %943 = vmatpush2.bf16.msra.mxu0 0
        %944 = vmatprep.mubr.bf16.mxu0 0
        %945 = vmatmul.mubr.bf16.gmra.mxu0 %v814
        %v946 = vpop.f32.mrf.mxu0
        %v947 = vadd.f32 %v554, %v946
        %v948 = vpop.f32.mrf.mxu0
        %v949 = vpop.f32.mrf.mxu0
        %v950 = vadd.f32 %v557, %v949
        %v951 = vpop.f32.mrf.mxu0
        %952 = vmatprep.mubr.bf16.mxu0 0
        %953 = vmatmul.mubr.bf16.gmra.mxu0 %v817
        %v954 = vpop.f32.mrf.mxu0
        %v955 = vadd.f32 %v562, %v954
        %v956 = vpop.f32.mrf.mxu0
        %v957 = vpop.f32.mrf.mxu0
        %v958 = vadd.f32 %v565, %v957
        %v959 = vpop.f32.mrf.mxu0
        %960 = vmatprep.mubr.bf16.mxu0 0
        %961 = vmatmul.mubr.bf16.gmra.mxu0 %v820
        %v962 = vpop.f32.mrf.mxu0
        %v963 = vadd.f32 %v570, %v962
        %v964 = vpop.f32.mrf.mxu0
        %v965 = vpop.f32.mrf.mxu0
        %v966 = vadd.f32 %v573, %v965
        %v967 = vpop.f32.mrf.mxu0
        %968 = vmatprep.mubr.bf16.mxu0 0
        %969 = vmatmul.mubr.bf16.gmra.mxu0 %v823
        %v970 = vpop.f32.mrf.mxu0
        %v971 = vadd.f32 %v578, %v970
        %v972 = vpop.f32.mrf.mxu0
        %v973 = vpop.f32.mrf.mxu0
        %v974 = vadd.f32 %v581, %v973
        %v975 = vpop.f32.mrf.mxu0
        %976 = vmatprep.mubr.bf16.mxu0 0
        %977 = vmatmul.mubr.bf16.gmra.mxu0 %v826
        %v978 = vpop.f32.mrf.mxu0
        %v979 = vadd.f32 %v586, %v978
        %v980 = vpop.f32.mrf.mxu0
        %v981 = vpop.f32.mrf.mxu0
        %v982 = vadd.f32 %v589, %v981
        %v983 = vpop.f32.mrf.mxu0
        %984 = vmatprep.mubr.bf16.mxu0 0
        %985 = vmatmul.mubr.bf16.gmra.mxu0 %v829
        %v986 = vpop.f32.mrf.mxu0
        %v987 = vadd.f32 %v594, %v986
        %v988 = vpop.f32.mrf.mxu0
        %v989 = vpop.f32.mrf.mxu0
        %v990 = vadd.f32 %v597, %v989
        %v991 = vpop.f32.mrf.mxu0
        %992 = vmatprep.mubr.bf16.mxu0 0
        %993 = vmatmul.mubr.bf16.gmra.mxu0 %v832
        %v994 = vpop.f32.mrf.mxu0
        %v995 = vadd.f32 %v602, %v994
        %v996 = vpop.f32.mrf.mxu0
        %v997 = vpop.f32.mrf.mxu0
        %v998 = vadd.f32 %v605, %v997
        %v999 = vpop.f32.mrf.mxu0
        %1000 = vmatprep.mubr.bf16.mxu0 0
        %1001 = vmatmul.mubr.bf16.gmra.mxu0 %v835
        %v1002 = vpop.f32.mrf.mxu0
        %v1003 = vadd.f32 %v610, %v1002
        %v1004 = vpop.f32.mrf.mxu0
        %v1005 = vpop.f32.mrf.mxu0
        %v1006 = vadd.f32 %v613, %v1005
        %v1007 = vpop.f32.mrf.mxu0
        %1008 = vmatprep.mubr.bf16.mxu0 0
        %1009 = vmatmul.mubr.bf16.gmra.mxu0 %v838
        %v1010 = vpop.f32.mrf.mxu0
        %v1011 = vadd.f32 %v618, %v1010
        %v1012 = vpop.f32.mrf.mxu0
        %v1013 = vpop.f32.mrf.mxu0
        %v1014 = vadd.f32 %v621, %v1013
        %v1015 = vpop.f32.mrf.mxu0
        %1016 = vmatprep.mubr.bf16.mxu0 0
        %1017 = vmatmul.mubr.bf16.gmra.mxu0 %v841
        %v1018 = vpop.f32.mrf.mxu0
        %v1019 = vadd.f32 %v626, %v1018
        %v1020 = vpop.f32.mrf.mxu0
        %v1021 = vpop.f32.mrf.mxu0
        %v1022 = vadd.f32 %v629, %v1021
        %v1023 = vpop.f32.mrf.mxu0
        %1024 = vmatprep.mubr.bf16.mxu0 0
        %1025 = vmatmul.mubr.bf16.gmra.mxu0 %v844
        %v1026 = vpop.f32.mrf.mxu0
        %v1027 = vadd.f32 %v634, %v1026
        %v1028 = vpop.f32.mrf.mxu0
        %v1029 = vpop.f32.mrf.mxu0
        %v1030 = vadd.f32 %v637, %v1029
        %v1031 = vpop.f32.mrf.mxu0
        %1032 = vmatprep.mubr.bf16.mxu0 0
        %1033 = vmatmul.mubr.bf16.gmra.mxu0 %v847
        %v1034 = vpop.f32.mrf.mxu0
        %v1035 = vadd.f32 %v642, %v1034
        %v1036 = vpop.f32.mrf.mxu0
        %v1037 = vpop.f32.mrf.mxu0
        %v1038 = vadd.f32 %v645, %v1037
        %v1039 = vpop.f32.mrf.mxu0
        %1040 = vmatprep.mubr.bf16.mxu0 0
        %1041 = vmatmul.mubr.bf16.gmra.mxu0 %v850
        %v1042 = vpop.f32.mrf.mxu0
        %v1043 = vadd.f32 %v650, %v1042
        %v1044 = vpop.f32.mrf.mxu0
        %v1045 = vpop.f32.mrf.mxu0
        %v1046 = vadd.f32 %v653, %v1045
        %v1047 = vpop.f32.mrf.mxu0
        %1048 = vmatprep.mubr.bf16.mxu0 0
        %1049 = vmatmul.mubr.bf16.gmra.mxu0 %v853
        %v1050 = vpop.f32.mrf.mxu0
        %v1051 = vadd.f32 %v658, %v1050
        %v1052 = vpop.f32.mrf.mxu0
        %v1053 = vpop.f32.mrf.mxu0
        %v1054 = vadd.f32 %v661, %v1053
        %v1055 = vpop.f32.mrf.mxu0
        %1056 = vmatprep.mubr.bf16.mxu0 0
        %1057 = vmatmul.mubr.bf16.gmra.mxu0 %v856
        %v1058 = vpop.f32.mrf.mxu0
        %v1059 = vadd.f32 %v666, %v1058
        %v1060 = vpop.f32.mrf.mxu0
        %v1061 = vpop.f32.mrf.mxu0
        %v1062 = vadd.f32 %v669, %v1061
        %v1063 = vpop.f32.mrf.mxu0
        %1064 = vmatprep.mubr.bf16.mxu0 0
        %1065 = vmatmul.mubr.bf16.gmra.mxu0 %v859
        %v1066 = vpop.f32.mrf.mxu0
        %v1067 = vadd.f32 %v674, %v1066
        %v1068 = vpop.f32.mrf.mxu0
        %v1069 = vpop.f32.mrf.mxu0
        %v1070 = vadd.f32 %v677, %v1069
        %v1071 = vpop.f32.mrf.mxu0
        %1072 = vmatprep.mubr.bf16.mxu0 0
        %1073 = vmatmul.mubr.bf16.gmra.mxu0 %v862
        %v1074 = vpop.f32.mrf.mxu0
        %v1075 = vadd.f32 %v682, %v1074
        %v1076 = vpop.f32.mrf.mxu0
        %v1077 = vpop.f32.mrf.mxu0
        %v1078 = vadd.f32 %v685, %v1077
        %v1079 = vpop.f32.mrf.mxu0
        %1080 = vmatprep.mubr.bf16.mxu0 0
        %1081 = vmatmul.mubr.bf16.gmra.mxu0 %v865
        %v1082 = vpop.f32.mrf.mxu0
        %v1083 = vadd.f32 %v690, %v1082
        %v1084 = vpop.f32.mrf.mxu0
        %v1085 = vpop.f32.mrf.mxu0
        %v1086 = vadd.f32 %v693, %v1085
        %v1087 = vpop.f32.mrf.mxu0
        %1088 = vmatprep.mubr.bf16.mxu0 0
        %1089 = vmatmul.mubr.bf16.gmra.mxu0 %v868
        %v1090 = vpop.f32.mrf.mxu0
        %v1091 = vadd.f32 %v698, %v1090
        %v1092 = vpop.f32.mrf.mxu0
        %v1093 = vpop.f32.mrf.mxu0
        %v1094 = vadd.f32 %v701, %v1093
        %v1095 = vpop.f32.mrf.mxu0
        %1096 = vmatprep.mubr.bf16.mxu0 0
        %1097 = vmatmul.mubr.bf16.gmra.mxu0 %v871
        %v1098 = vpop.f32.mrf.mxu0
        %v1099 = vadd.f32 %v706, %v1098
        %v1100 = vpop.f32.mrf.mxu0
        %v1101 = vpop.f32.mrf.mxu0
        %v1102 = vadd.f32 %v709, %v1101
        %v1103 = vpop.f32.mrf.mxu0
        %1104 = vmatprep.mubr.bf16.mxu0 0
        %1105 = vmatmul.mubr.bf16.gmra.mxu0 %v874
        %v1106 = vpop.f32.mrf.mxu0
        %v1107 = vadd.f32 %v714, %v1106
        %v1108 = vpop.f32.mrf.mxu0
        %v1109 = vpop.f32.mrf.mxu0
        %v1110 = vadd.f32 %v717, %v1109
        %v1111 = vpop.f32.mrf.mxu0
        %1112 = vmatprep.mubr.bf16.mxu0 0
        %1113 = vmatmul.mubr.bf16.gmra.mxu0 %v877
        %v1114 = vpop.f32.mrf.mxu0
        %v1115 = vadd.f32 %v722, %v1114
        %v1116 = vpop.f32.mrf.mxu0
        %v1117 = vpop.f32.mrf.mxu0
        %v1118 = vadd.f32 %v725, %v1117
        %v1119 = vpop.f32.mrf.mxu0
        %1120 = vmatprep.mubr.bf16.mxu0 0
        %1121 = vmatmul.mubr.bf16.gmra.mxu0 %v880
        %v1122 = vpop.f32.mrf.mxu0
        %v1123 = vadd.f32 %v730, %v1122
        %v1124 = vpop.f32.mrf.mxu0
        %v1125 = vpop.f32.mrf.mxu0
        %v1126 = vadd.f32 %v733, %v1125
        %v1127 = vpop.f32.mrf.mxu0
        %1128 = vmatprep.mubr.bf16.mxu0 0
        %1129 = vmatmul.mubr.bf16.gmra.mxu0 %v883
        %v1130 = vpop.f32.mrf.mxu0
        %v1131 = vadd.f32 %v738, %v1130
        %v1132 = vpop.f32.mrf.mxu0
        %v1133 = vpop.f32.mrf.mxu0
        %v1134 = vadd.f32 %v741, %v1133
        %v1135 = vpop.f32.mrf.mxu0
        %1136 = vmatprep.mubr.bf16.mxu0 0
        %1137 = vmatmul.mubr.bf16.gmra.mxu0 %v886
        %v1138 = vpop.f32.mrf.mxu0
        %v1139 = vadd.f32 %v746, %v1138
        %v1140 = vpop.f32.mrf.mxu0
        %v1141 = vpop.f32.mrf.mxu0
        %v1142 = vadd.f32 %v749, %v1141
        %v1143 = vpop.f32.mrf.mxu0
        %1144 = vmatprep.mubr.bf16.mxu0 0
        %1145 = vmatmul.mubr.bf16.gmra.mxu0 %v889
        %v1146 = vpop.f32.mrf.mxu0
        %v1147 = vadd.f32 %v754, %v1146
        %v1148 = vpop.f32.mrf.mxu0
        %v1149 = vpop.f32.mrf.mxu0
        %v1150 = vadd.f32 %v757, %v1149
        %v1151 = vpop.f32.mrf.mxu0
        %1152 = vmatprep.mubr.bf16.mxu0 0
        %1153 = vmatmul.mubr.bf16.gmra.mxu0 %v892
        %v1154 = vpop.f32.mrf.mxu0
        %v1155 = vadd.f32 %v762, %v1154
        %v1156 = vpop.f32.mrf.mxu0
        %v1157 = vpop.f32.mrf.mxu0
        %v1158 = vadd.f32 %v765, %v1157
        %v1159 = vpop.f32.mrf.mxu0
        %1160 = vmatprep.mubr.bf16.mxu0 0
        %1161 = vmatmul.mubr.bf16.gmra.mxu0 %v895
        %v1162 = vpop.f32.mrf.mxu0
        %v1163 = vadd.f32 %v770, %v1162
        %v1164 = vpop.f32.mrf.mxu0
        %v1165 = vpop.f32.mrf.mxu0
        %v1166 = vadd.f32 %v773, %v1165
        %v1167 = vpop.f32.mrf.mxu0
        %1168 = vmatprep.mubr.bf16.mxu0 0
        %1169 = vmatmul.mubr.bf16.gmra.mxu0 %v898
        %v1170 = vpop.f32.mrf.mxu0
        %v1171 = vadd.f32 %v778, %v1170
        %v1172 = vpop.f32.mrf.mxu0
        %v1173 = vpop.f32.mrf.mxu0
        %v1174 = vadd.f32 %v781, %v1173
        %v1175 = vpop.f32.mrf.mxu0
        %1176 = vmatprep.mubr.bf16.mxu0 0
        %1177 = vmatmul.mubr.bf16.gmra.mxu0 %v901
        %v1178 = vpop.f32.mrf.mxu0
        %v1179 = vadd.f32 %v786, %v1178
        %v1180 = vpop.f32.mrf.mxu0
        %v1181 = vpop.f32.mrf.mxu0
        %v1182 = vadd.f32 %v789, %v1181
        %v1183 = vpop.f32.mrf.mxu0
        %1184 = vmatprep.mubr.bf16.mxu0 0
        %1185 = vmatmul.mubr.bf16.gmra.mxu0 %v904
        %v1186 = vpop.f32.mrf.mxu0
        %v1187 = vadd.f32 %v794, %v1186
        %v1188 = vpop.f32.mrf.mxu0
        %v1189 = vpop.f32.mrf.mxu0
        %v1190 = vadd.f32 %v797, %v1189
        %v1191 = vpop.f32.mrf.mxu0
        %1192 = vmatprep.mubr.bf16.mxu0 0
        %1193 = vmatmul.mubr.bf16.gmra.mxu0 %v907
        %v1194 = vpop.f32.mrf.mxu0
        %v1195 = vadd.f32 %v802, %v1194
        %v1196 = vpop.f32.mrf.mxu0
        %v1197 = vpop.f32.mrf.mxu0
        %v1198 = vadd.f32 %v805, %v1197
        %v1199 = vpop.f32.mrf.mxu0
        %1200 = vdwg.mxu0
        %s1201 = sadd.s32 %s212, 29
        %s1202 = scalar_lea.vmem %s209, %s1201
        %v1203 = vld [vmem:[%s1202] sm:$0xff]
        %v1204 = vld [vmem:[%s1202 + $0x8] sm:$0xff]
        %v1205 = vld [vmem:[%s1202 + $0x10] sm:$0xff]
        %v1206 = vld [vmem:[%s1202 + $0x18] sm:$0xff]
        %v1207 = vld [vmem:[%s1202 + $0x20] sm:$0xff]
        %v1208 = vld [vmem:[%s1202 + $0x28] sm:$0xff]
        %v1209 = vld [vmem:[%s1202 + $0x30] sm:$0xff]
        %v1210 = vld [vmem:[%s1202 + $0x38] sm:$0xff]
        %v1211 = vld [vmem:[%s1202 + $0x40] sm:$0xff]
        %v1212 = vld [vmem:[%s1202 + $0x48] sm:$0xff]
        %v1213 = vld [vmem:[%s1202 + $0x50] sm:$0xff]
        %v1214 = vld [vmem:[%s1202 + $0x58] sm:$0xff]
        %v1215 = vld [vmem:[%s1202 + $0x60] sm:$0xff]
        %v1216 = vld [vmem:[%s1202 + $0x68] sm:$0xff]
        %v1217 = vld [vmem:[%s1202 + $0x70] sm:$0xff]
        %v1218 = vld [vmem:[%s1202 + $0x78] sm:$0xff]
        %v1219 = vld [vmem:[%s1202 + $0x80] sm:$0xff]
        %v1220 = vld [vmem:[%s1202 + $0x88] sm:$0xff]
        %v1221 = vld [vmem:[%s1202 + $0x90] sm:$0xff]
        %v1222 = vld [vmem:[%s1202 + $0x98] sm:$0xff]
        %v1223 = vld [vmem:[%s1202 + $0xa0] sm:$0xff]
        %v1224 = vld [vmem:[%s1202 + $0xa8] sm:$0xff]
        %v1225 = vld [vmem:[%s1202 + $0xb0] sm:$0xff]
        %v1226 = vld [vmem:[%s1202 + $0xb8] sm:$0xff]
        %v1227 = vld [vmem:[%s1202 + $0xc0] sm:$0xff]
        %v1228 = vld [vmem:[%s1202 + $0xc8] sm:$0xff]
        %v1229 = vld [vmem:[%s1202 + $0xd0] sm:$0xff]
        %v1230 = vld [vmem:[%s1202 + $0xd8] sm:$0xff]
        %v1231 = vld [vmem:[%s1202 + $0xe0] sm:$0xff]
        %v1232 = vld [vmem:[%s1202 + $0xe8] sm:$0xff]
        %v1233 = vld [vmem:[%s1202 + $0xf0] sm:$0xff]
        %v1234 = vld [vmem:[%s1202 + $0xf8] sm:$0xff]
        %v1235 = vld [vmem:[%s1202 + $0x100] sm:$0xff]
        %v1236 = vld [vmem:[%s1202 + $0x108] sm:$0xff]
        %v1237 = vld [vmem:[%s1202 + $0x110] sm:$0xff]
        %v1238 = vld [vmem:[%s1202 + $0x118] sm:$0xff]
        %v1239 = vld [vmem:[%s1202 + $0x120] sm:$0xff]
        %v1240 = vld [vmem:[%s1202 + $0x128] sm:$0xff]
        %v1241 = vld [vmem:[%s1202 + $0x130] sm:$0xff]
        %v1242 = vld [vmem:[%s1202 + $0x138] sm:$0xff]
        %v1243 = vld [vmem:[%s1202 + $0x140] sm:$0xff]
        %v1244 = vld [vmem:[%s1202 + $0x148] sm:$0xff]
        %v1245 = vld [vmem:[%s1202 + $0x150] sm:$0xff]
        %v1246 = vld [vmem:[%s1202 + $0x158] sm:$0xff]
        %v1247 = vld [vmem:[%s1202 + $0x160] sm:$0xff]
        %v1248 = vld [vmem:[%s1202 + $0x168] sm:$0xff]
        %v1249 = vld [vmem:[%s1202 + $0x170] sm:$0xff]
        %v1250 = vld [vmem:[%s1202 + $0x178] sm:$0xff]
        %v1251 = vld [vmem:[%s1202 + $0x180] sm:$0xff]
        %v1252 = vld [vmem:[%s1202 + $0x188] sm:$0xff]
        %v1253 = vld [vmem:[%s1202 + $0x190] sm:$0xff]
        %v1254 = vld [vmem:[%s1202 + $0x198] sm:$0xff]
        %v1255 = vld [vmem:[%s1202 + $0x1a0] sm:$0xff]
        %v1256 = vld [vmem:[%s1202 + $0x1a8] sm:$0xff]
        %v1257 = vld [vmem:[%s1202 + $0x1b0] sm:$0xff]
        %v1258 = vld [vmem:[%s1202 + $0x1b8] sm:$0xff]
        %v1259 = vld [vmem:[%s1202 + $0x1c0] sm:$0xff]
        %v1260 = vld [vmem:[%s1202 + $0x1c8] sm:$0xff]
        %v1261 = vld [vmem:[%s1202 + $0x1d0] sm:$0xff]
        %v1262 = vld [vmem:[%s1202 + $0x1d8] sm:$0xff]
        %v1263 = vld [vmem:[%s1202 + $0x1e0] sm:$0xff]
        %v1264 = vld [vmem:[%s1202 + $0x1e8] sm:$0xff]
        %v1265 = vld [vmem:[%s1202 + $0x1f0] sm:$0xff]
        %v1266 = vld [vmem:[%s1202 + $0x1f8] sm:$0xff]
        %v1267 = vpack.c.bf16 %v1204, %v1203
        %v1268 = vpack.c.bf16 %v1206, %v1205
        %v1269 = vpack.c.bf16 %v1208, %v1207
        %v1270 = vpack.c.bf16 %v1210, %v1209
        %v1271 = vpack.c.bf16 %v1212, %v1211
        %v1272 = vpack.c.bf16 %v1214, %v1213
        %v1273 = vpack.c.bf16 %v1216, %v1215
        %v1274 = vpack.c.bf16 %v1218, %v1217
        %v1275 = vpack.c.bf16 %v1220, %v1219
        %v1276 = vpack.c.bf16 %v1222, %v1221
        %v1277 = vpack.c.bf16 %v1224, %v1223
        %v1278 = vpack.c.bf16 %v1226, %v1225
        %v1279 = vpack.c.bf16 %v1228, %v1227
        %v1280 = vpack.c.bf16 %v1230, %v1229
        %v1281 = vpack.c.bf16 %v1232, %v1231
        %v1282 = vpack.c.bf16 %v1234, %v1233
        %v1283 = vpack.c.bf16 %v1236, %v1235
        %v1284 = vpack.c.bf16 %v1238, %v1237
        %v1285 = vpack.c.bf16 %v1240, %v1239
        %v1286 = vpack.c.bf16 %v1242, %v1241
        %v1287 = vpack.c.bf16 %v1244, %v1243
        %v1288 = vpack.c.bf16 %v1246, %v1245
        %v1289 = vpack.c.bf16 %v1248, %v1247
        %v1290 = vpack.c.bf16 %v1250, %v1249
        %v1291 = vpack.c.bf16 %v1252, %v1251
        %v1292 = vpack.c.bf16 %v1254, %v1253
        %v1293 = vpack.c.bf16 %v1256, %v1255
        %v1294 = vpack.c.bf16 %v1258, %v1257
        %v1295 = vpack.c.bf16 %v1260, %v1259
        %v1296 = vpack.c.bf16 %v1262, %v1261
        %v1297 = vpack.c.bf16 %v1264, %v1263
        %v1298 = vpack.c.bf16 %v1266, %v1265
        %s1299 = scalar_lea.vmem %s1, 16
        %v1300 = vld [vmem:[%s1299] sm:$0xf]
        %v1301 = vld [vmem:[%s1299 + $0x4] sm:$0x3]
        %v1304 = vunpack.c.l.b16 %v1300
        %v1305 = vunpack.c.l.b16 %v1301
        %v1306 = vpack.c.b16 %v1305, %v1304
        %v1308 = vsel %vm418, %v1267, 0
        %v1311 = vsel %vm418, %v1268, 0
        %v1314 = vsel %vm418, %v1269, 0
        %v1317 = vsel %vm418, %v1270, 0
        %v1320 = vsel %vm418, %v1271, 0
        %v1323 = vsel %vm418, %v1272, 0
        %v1326 = vsel %vm418, %v1273, 0
        %v1329 = vsel %vm418, %v1274, 0
        %v1332 = vsel %vm418, %v1275, 0
        %v1335 = vsel %vm418, %v1276, 0
        %v1338 = vsel %vm418, %v1277, 0
        %v1341 = vsel %vm418, %v1278, 0
        %v1344 = vsel %vm418, %v1279, 0
        %v1347 = vsel %vm418, %v1280, 0
        %v1350 = vsel %vm418, %v1281, 0
        %v1353 = vsel %vm418, %v1282, 0
        %v1356 = vsel %vm418, %v1283, 0
        %v1359 = vsel %vm418, %v1284, 0
        %v1362 = vsel %vm418, %v1285, 0
        %v1365 = vsel %vm418, %v1286, 0
        %v1368 = vsel %vm418, %v1287, 0
        %v1371 = vsel %vm418, %v1288, 0
        %v1374 = vsel %vm418, %v1289, 0
        %v1377 = vsel %vm418, %v1290, 0
        %v1380 = vsel %vm418, %v1291, 0
        %v1383 = vsel %vm418, %v1292, 0
        %v1386 = vsel %vm418, %v1293, 0
        %v1389 = vsel %vm418, %v1294, 0
        %v1392 = vsel %vm418, %v1295, 0
        %v1395 = vsel %vm418, %v1296, 0
        %v1398 = vsel %vm418, %v1297, 0
        %v1401 = vsel %vm418, %v1298, 0
        %v1404 = vsel %vm515, %v1306, 0
        %1406 = vmatprep.subr.bf16.mxu0 0
        %1407 = vmatpush1.bf16.msra.mxu0 0
        %1408 = vmatprep.subr.bf16.mxu0 0
        %1409 = vmatpush1.bf16.msra.mxu0 0
        %1410 = vmatprep.subr.bf16.mxu0 0
        %1411 = vmatpush1.bf16.msra.mxu0 0
        %1412 = vmatprep.subr.bf16.mxu0 0
        %1413 = vmatpush1.bf16.msra.mxu0 0
        %1414 = vmatprep.subr.bf16.mxu0 0
        %1415 = vmatpush1.bf16.msra.mxu0 0
        %1416 = vmatprep.subr.bf16.mxu0 0
        %1417 = vmatpush1.bf16.msra.mxu0 0
        %1418 = vmatprep.subr.bf16.mxu0 0
        %1419 = vmatpush1.bf16.msra.mxu0 0
        %1420 = vmatprep.subr.bf16.mxu0 0
        %1421 = vmatpush1.bf16.msra.mxu0 %v1404
        %1422 = vmatprep.subr.bf16.mxu0 0
        %1423 = vmatpush2.bf16.msra.mxu0 0
        %1424 = vmatprep.subr.bf16.mxu0 0
        %1425 = vmatpush2.bf16.msra.mxu0 0
        %1426 = vmatprep.subr.bf16.mxu0 0
        %1427 = vmatpush2.bf16.msra.mxu0 0
        %1428 = vmatprep.subr.bf16.mxu0 0
        %1429 = vmatpush2.bf16.msra.mxu0 0
        %1430 = vmatprep.subr.bf16.mxu0 0
        %1431 = vmatpush2.bf16.msra.mxu0 0
        %1432 = vmatprep.subr.bf16.mxu0 0
        %1433 = vmatpush2.bf16.msra.mxu0 0
        %1434 = vmatprep.subr.bf16.mxu0 0
        %1435 = vmatpush2.bf16.msra.mxu0 0
        %1436 = vmatprep.subr.bf16.mxu0 0
        %1437 = vmatpush2.bf16.msra.mxu0 0
        %1438 = vmatprep.mubr.bf16.mxu0 0
        %1439 = vmatmul.mubr.bf16.gmra.mxu0 %v1308
        %v1440 = vpop.f32.mrf.mxu0
        %v1441 = vadd.f32 0.0, %v1440
        %v1442 = vpop.f32.mrf.mxu0
        %v1443 = vpop.f32.mrf.mxu0
        %v1444 = vadd.f32 0.0, %v1443
        %v1445 = vpop.f32.mrf.mxu0
        %1446 = vmatprep.mubr.bf16.mxu0 0
        %1447 = vmatmul.mubr.bf16.gmra.mxu0 %v1311
        %v1448 = vpop.f32.mrf.mxu0
        %v1449 = vadd.f32 0.0, %v1448
        %v1450 = vpop.f32.mrf.mxu0
        %v1451 = vpop.f32.mrf.mxu0
        %v1452 = vadd.f32 0.0, %v1451
        %v1453 = vpop.f32.mrf.mxu0
        %1454 = vmatprep.mubr.bf16.mxu0 0
        %1455 = vmatmul.mubr.bf16.gmra.mxu0 %v1314
        %v1456 = vpop.f32.mrf.mxu0
        %v1457 = vadd.f32 0.0, %v1456
        %v1458 = vpop.f32.mrf.mxu0
        %v1459 = vpop.f32.mrf.mxu0
        %v1460 = vadd.f32 0.0, %v1459
        %v1461 = vpop.f32.mrf.mxu0
        %1462 = vmatprep.mubr.bf16.mxu0 0
        %1463 = vmatmul.mubr.bf16.gmra.mxu0 %v1317
        %v1464 = vpop.f32.mrf.mxu0
        %v1465 = vadd.f32 0.0, %v1464
        %v1466 = vpop.f32.mrf.mxu0
        %v1467 = vpop.f32.mrf.mxu0
        %v1468 = vadd.f32 0.0, %v1467
        %v1469 = vpop.f32.mrf.mxu0
        %1470 = vmatprep.mubr.bf16.mxu0 0
        %1471 = vmatmul.mubr.bf16.gmra.mxu0 %v1320
        %v1472 = vpop.f32.mrf.mxu0
        %v1473 = vadd.f32 0.0, %v1472
        %v1474 = vpop.f32.mrf.mxu0
        %v1475 = vpop.f32.mrf.mxu0
        %v1476 = vadd.f32 0.0, %v1475
        %v1477 = vpop.f32.mrf.mxu0
        %1478 = vmatprep.mubr.bf16.mxu0 0
        %1479 = vmatmul.mubr.bf16.gmra.mxu0 %v1323
        %v1480 = vpop.f32.mrf.mxu0
        %v1481 = vadd.f32 0.0, %v1480
        %v1482 = vpop.f32.mrf.mxu0
        %v1483 = vpop.f32.mrf.mxu0
        %v1484 = vadd.f32 0.0, %v1483
        %v1485 = vpop.f32.mrf.mxu0
        %1486 = vmatprep.mubr.bf16.mxu0 0
        %1487 = vmatmul.mubr.bf16.gmra.mxu0 %v1326
        %v1488 = vpop.f32.mrf.mxu0
        %v1489 = vadd.f32 0.0, %v1488
        %v1490 = vpop.f32.mrf.mxu0
        %v1491 = vpop.f32.mrf.mxu0
        %v1492 = vadd.f32 0.0, %v1491
        %v1493 = vpop.f32.mrf.mxu0
        %1494 = vmatprep.mubr.bf16.mxu0 0
        %1495 = vmatmul.mubr.bf16.gmra.mxu0 %v1329
        %v1496 = vpop.f32.mrf.mxu0
        %v1497 = vadd.f32 0.0, %v1496
        %v1498 = vpop.f32.mrf.mxu0
        %v1499 = vpop.f32.mrf.mxu0
        %v1500 = vadd.f32 0.0, %v1499
        %v1501 = vpop.f32.mrf.mxu0
        %1502 = vmatprep.mubr.bf16.mxu0 0
        %1503 = vmatmul.mubr.bf16.gmra.mxu0 %v1332
        %v1504 = vpop.f32.mrf.mxu0
        %v1505 = vadd.f32 0.0, %v1504
        %v1506 = vpop.f32.mrf.mxu0
        %v1507 = vpop.f32.mrf.mxu0
        %v1508 = vadd.f32 0.0, %v1507
        %v1509 = vpop.f32.mrf.mxu0
        %1510 = vmatprep.mubr.bf16.mxu0 0
        %1511 = vmatmul.mubr.bf16.gmra.mxu0 %v1335
        %v1512 = vpop.f32.mrf.mxu0
        %v1513 = vadd.f32 0.0, %v1512
        %v1514 = vpop.f32.mrf.mxu0
        %v1515 = vpop.f32.mrf.mxu0
        %v1516 = vadd.f32 0.0, %v1515
        %v1517 = vpop.f32.mrf.mxu0
        %1518 = vmatprep.mubr.bf16.mxu0 0
        %1519 = vmatmul.mubr.bf16.gmra.mxu0 %v1338
        %v1520 = vpop.f32.mrf.mxu0
        %v1521 = vadd.f32 0.0, %v1520
        %v1522 = vpop.f32.mrf.mxu0
        %v1523 = vpop.f32.mrf.mxu0
        %v1524 = vadd.f32 0.0, %v1523
        %v1525 = vpop.f32.mrf.mxu0
        %1526 = vmatprep.mubr.bf16.mxu0 0
        %1527 = vmatmul.mubr.bf16.gmra.mxu0 %v1341
        %v1528 = vpop.f32.mrf.mxu0
        %v1529 = vadd.f32 0.0, %v1528
        %v1530 = vpop.f32.mrf.mxu0
        %v1531 = vpop.f32.mrf.mxu0
        %v1532 = vadd.f32 0.0, %v1531
        %v1533 = vpop.f32.mrf.mxu0
        %1534 = vmatprep.mubr.bf16.mxu0 0
        %1535 = vmatmul.mubr.bf16.gmra.mxu0 %v1344
        %v1536 = vpop.f32.mrf.mxu0
        %v1537 = vadd.f32 0.0, %v1536
        %v1538 = vpop.f32.mrf.mxu0
        %v1539 = vpop.f32.mrf.mxu0
        %v1540 = vadd.f32 0.0, %v1539
        %v1541 = vpop.f32.mrf.mxu0
        %1542 = vmatprep.mubr.bf16.mxu0 0
        %1543 = vmatmul.mubr.bf16.gmra.mxu0 %v1347
        %v1544 = vpop.f32.mrf.mxu0
        %v1545 = vadd.f32 0.0, %v1544
        %v1546 = vpop.f32.mrf.mxu0
        %v1547 = vpop.f32.mrf.mxu0
        %v1548 = vadd.f32 0.0, %v1547
        %v1549 = vpop.f32.mrf.mxu0
        %1550 = vmatprep.mubr.bf16.mxu0 0
        %1551 = vmatmul.mubr.bf16.gmra.mxu0 %v1350
        %v1552 = vpop.f32.mrf.mxu0
        %v1553 = vadd.f32 0.0, %v1552
        %v1554 = vpop.f32.mrf.mxu0
        %v1555 = vpop.f32.mrf.mxu0
        %v1556 = vadd.f32 0.0, %v1555
        %v1557 = vpop.f32.mrf.mxu0
        %1558 = vmatprep.mubr.bf16.mxu0 0
        %1559 = vmatmul.mubr.bf16.gmra.mxu0 %v1353
        %v1560 = vpop.f32.mrf.mxu0
        %v1561 = vadd.f32 0.0, %v1560
        %v1562 = vpop.f32.mrf.mxu0
        %v1563 = vpop.f32.mrf.mxu0
        %v1564 = vadd.f32 0.0, %v1563
        %v1565 = vpop.f32.mrf.mxu0
        %1566 = vmatprep.mubr.bf16.mxu0 0
        %1567 = vmatmul.mubr.bf16.gmra.mxu0 %v1356
        %v1568 = vpop.f32.mrf.mxu0
        %v1569 = vadd.f32 0.0, %v1568
        %v1570 = vpop.f32.mrf.mxu0
        %v1571 = vpop.f32.mrf.mxu0
        %v1572 = vadd.f32 0.0, %v1571
        %v1573 = vpop.f32.mrf.mxu0
        %1574 = vmatprep.mubr.bf16.mxu0 0
        %1575 = vmatmul.mubr.bf16.gmra.mxu0 %v1359
        %v1576 = vpop.f32.mrf.mxu0
        %v1577 = vadd.f32 0.0, %v1576
        %v1578 = vpop.f32.mrf.mxu0
        %v1579 = vpop.f32.mrf.mxu0
        %v1580 = vadd.f32 0.0, %v1579
        %v1581 = vpop.f32.mrf.mxu0
        %1582 = vmatprep.mubr.bf16.mxu0 0
        %1583 = vmatmul.mubr.bf16.gmra.mxu0 %v1362
        %v1584 = vpop.f32.mrf.mxu0
        %v1585 = vadd.f32 0.0, %v1584
        %v1586 = vpop.f32.mrf.mxu0
        %v1587 = vpop.f32.mrf.mxu0
        %v1588 = vadd.f32 0.0, %v1587
        %v1589 = vpop.f32.mrf.mxu0
        %1590 = vmatprep.mubr.bf16.mxu0 0
        %1591 = vmatmul.mubr.bf16.gmra.mxu0 %v1365
        %v1592 = vpop.f32.mrf.mxu0
        %v1593 = vadd.f32 0.0, %v1592
        %v1594 = vpop.f32.mrf.mxu0
        %v1595 = vpop.f32.mrf.mxu0
        %v1596 = vadd.f32 0.0, %v1595
        %v1597 = vpop.f32.mrf.mxu0
        %1598 = vmatprep.mubr.bf16.mxu0 0
        %1599 = vmatmul.mubr.bf16.gmra.mxu0 %v1368
        %v1600 = vpop.f32.mrf.mxu0
        %v1601 = vadd.f32 0.0, %v1600
        %v1602 = vpop.f32.mrf.mxu0
        %v1603 = vpop.f32.mrf.mxu0
        %v1604 = vadd.f32 0.0, %v1603
        %v1605 = vpop.f32.mrf.mxu0
        %1606 = vmatprep.mubr.bf16.mxu0 0
        %1607 = vmatmul.mubr.bf16.gmra.mxu0 %v1371
        %v1608 = vpop.f32.mrf.mxu0
        %v1609 = vadd.f32 0.0, %v1608
        %v1610 = vpop.f32.mrf.mxu0
        %v1611 = vpop.f32.mrf.mxu0
        %v1612 = vadd.f32 0.0, %v1611
        %v1613 = vpop.f32.mrf.mxu0
        %1614 = vmatprep.mubr.bf16.mxu0 0
        %1615 = vmatmul.mubr.bf16.gmra.mxu0 %v1374
        %v1616 = vpop.f32.mrf.mxu0
        %v1617 = vadd.f32 0.0, %v1616
        %v1618 = vpop.f32.mrf.mxu0
        %v1619 = vpop.f32.mrf.mxu0
        %v1620 = vadd.f32 0.0, %v1619
        %v1621 = vpop.f32.mrf.mxu0
        %1622 = vmatprep.mubr.bf16.mxu0 0
        %1623 = vmatmul.mubr.bf16.gmra.mxu0 %v1377
        %v1624 = vpop.f32.mrf.mxu0
        %v1625 = vadd.f32 0.0, %v1624
        %v1626 = vpop.f32.mrf.mxu0
        %v1627 = vpop.f32.mrf.mxu0
        %v1628 = vadd.f32 0.0, %v1627
        %v1629 = vpop.f32.mrf.mxu0
        %1630 = vmatprep.mubr.bf16.mxu0 0
        %1631 = vmatmul.mubr.bf16.gmra.mxu0 %v1380
        %v1632 = vpop.f32.mrf.mxu0
        %v1633 = vadd.f32 0.0, %v1632
        %v1634 = vpop.f32.mrf.mxu0
        %v1635 = vpop.f32.mrf.mxu0
        %v1636 = vadd.f32 0.0, %v1635
        %v1637 = vpop.f32.mrf.mxu0
        %1638 = vmatprep.mubr.bf16.mxu0 0
        %1639 = vmatmul.mubr.bf16.gmra.mxu0 %v1383
        %v1640 = vpop.f32.mrf.mxu0
        %v1641 = vadd.f32 0.0, %v1640
        %v1642 = vpop.f32.mrf.mxu0
        %v1643 = vpop.f32.mrf.mxu0
        %v1644 = vadd.f32 0.0, %v1643
        %v1645 = vpop.f32.mrf.mxu0
        %1646 = vmatprep.mubr.bf16.mxu0 0
        %1647 = vmatmul.mubr.bf16.gmra.mxu0 %v1386
        %v1648 = vpop.f32.mrf.mxu0
        %v1649 = vadd.f32 0.0, %v1648
        %v1650 = vpop.f32.mrf.mxu0
        %v1651 = vpop.f32.mrf.mxu0
        %v1652 = vadd.f32 0.0, %v1651
        %v1653 = vpop.f32.mrf.mxu0
        %1654 = vmatprep.mubr.bf16.mxu0 0
        %1655 = vmatmul.mubr.bf16.gmra.mxu0 %v1389
        %v1656 = vpop.f32.mrf.mxu0
        %v1657 = vadd.f32 0.0, %v1656
        %v1658 = vpop.f32.mrf.mxu0
        %v1659 = vpop.f32.mrf.mxu0
        %v1660 = vadd.f32 0.0, %v1659
        %v1661 = vpop.f32.mrf.mxu0
        %1662 = vmatprep.mubr.bf16.mxu0 0
        %1663 = vmatmul.mubr.bf16.gmra.mxu0 %v1392
        %v1664 = vpop.f32.mrf.mxu0
        %v1665 = vadd.f32 0.0, %v1664
        %v1666 = vpop.f32.mrf.mxu0
        %v1667 = vpop.f32.mrf.mxu0
        %v1668 = vadd.f32 0.0, %v1667
        %v1669 = vpop.f32.mrf.mxu0
        %1670 = vmatprep.mubr.bf16.mxu0 0
        %1671 = vmatmul.mubr.bf16.gmra.mxu0 %v1395
        %v1672 = vpop.f32.mrf.mxu0
        %v1673 = vadd.f32 0.0, %v1672
        %v1674 = vpop.f32.mrf.mxu0
        %v1675 = vpop.f32.mrf.mxu0
        %v1676 = vadd.f32 0.0, %v1675
        %v1677 = vpop.f32.mrf.mxu0
        %1678 = vmatprep.mubr.bf16.mxu0 0
        %1679 = vmatmul.mubr.bf16.gmra.mxu0 %v1398
        %v1680 = vpop.f32.mrf.mxu0
        %v1681 = vadd.f32 0.0, %v1680
        %v1682 = vpop.f32.mrf.mxu0
        %v1683 = vpop.f32.mrf.mxu0
        %v1684 = vadd.f32 0.0, %v1683
        %v1685 = vpop.f32.mrf.mxu0
        %1686 = vmatprep.mubr.bf16.mxu0 0
        %1687 = vmatmul.mubr.bf16.gmra.mxu0 %v1401
        %v1688 = vpop.f32.mrf.mxu0
        %v1689 = vadd.f32 0.0, %v1688
        %v1690 = vpop.f32.mrf.mxu0
        %v1691 = vpop.f32.mrf.mxu0
        %v1692 = vadd.f32 0.0, %v1691
        %v1693 = vpop.f32.mrf.mxu0
        %1694 = vdwg.mxu0
        %v1695 = vadd.f32 %v947, %v1441
        %v1696 = vadd.f32 %v950, %v1444
        %v1697 = vadd.f32 %v955, %v1449
        %v1698 = vadd.f32 %v958, %v1452
        %v1699 = vadd.f32 %v963, %v1457
        %v1700 = vadd.f32 %v966, %v1460
        %v1701 = vadd.f32 %v971, %v1465
        %v1702 = vadd.f32 %v974, %v1468
        %v1703 = vadd.f32 %v979, %v1473
        %v1704 = vadd.f32 %v982, %v1476
        %v1705 = vadd.f32 %v987, %v1481
        %v1706 = vadd.f32 %v990, %v1484
        %v1707 = vadd.f32 %v995, %v1489
        %v1708 = vadd.f32 %v998, %v1492
        %v1709 = vadd.f32 %v1003, %v1497
        %v1710 = vadd.f32 %v1006, %v1500
        %v1711 = vadd.f32 %v1011, %v1505
        %v1712 = vadd.f32 %v1014, %v1508
        %v1713 = vadd.f32 %v1019, %v1513
        %v1714 = vadd.f32 %v1022, %v1516
        %v1715 = vadd.f32 %v1027, %v1521
        %v1716 = vadd.f32 %v1030, %v1524
        %v1717 = vadd.f32 %v1035, %v1529
        %v1718 = vadd.f32 %v1038, %v1532
        %v1719 = vadd.f32 %v1043, %v1537
        %v1720 = vadd.f32 %v1046, %v1540
        %v1721 = vadd.f32 %v1051, %v1545
        %v1722 = vadd.f32 %v1054, %v1548
        %v1723 = vadd.f32 %v1059, %v1553
        %v1724 = vadd.f32 %v1062, %v1556
        %v1725 = vadd.f32 %v1067, %v1561
        %v1726 = vadd.f32 %v1070, %v1564
        %v1727 = vadd.f32 %v1075, %v1569
        %v1728 = vadd.f32 %v1078, %v1572
        %v1729 = vadd.f32 %v1083, %v1577
        %v1730 = vadd.f32 %v1086, %v1580
        %v1731 = vadd.f32 %v1091, %v1585
        %v1732 = vadd.f32 %v1094, %v1588
        %v1733 = vadd.f32 %v1099, %v1593
        %v1734 = vadd.f32 %v1102, %v1596
        %v1735 = vadd.f32 %v1107, %v1601
        %v1736 = vadd.f32 %v1110, %v1604
        %v1737 = vadd.f32 %v1115, %v1609
        %v1738 = vadd.f32 %v1118, %v1612
        %v1739 = vadd.f32 %v1123, %v1617
        %v1740 = vadd.f32 %v1126, %v1620
        %v1741 = vadd.f32 %v1131, %v1625
        %v1742 = vadd.f32 %v1134, %v1628
        %v1743 = vadd.f32 %v1139, %v1633
        %v1744 = vadd.f32 %v1142, %v1636
        %v1745 = vadd.f32 %v1147, %v1641
        %v1746 = vadd.f32 %v1150, %v1644
        %v1747 = vadd.f32 %v1155, %v1649
        %v1748 = vadd.f32 %v1158, %v1652
        %v1749 = vadd.f32 %v1163, %v1657
        %v1750 = vadd.f32 %v1166, %v1660
        %v1751 = vadd.f32 %v1171, %v1665
        %v1752 = vadd.f32 %v1174, %v1668
        %v1753 = vadd.f32 %v1179, %v1673
        %v1754 = vadd.f32 %v1182, %v1676
        %v1755 = vadd.f32 %v1187, %v1681
        %v1756 = vadd.f32 %v1190, %v1684
        %v1757 = vadd.f32 %v1195, %v1689
        %v1758 = vadd.f32 %v1198, %v1692
        %s1759 = sadd.s32 %s212, 30
        %s1760 = scalar_lea.vmem %s209, %s1759
        %v1761 = vld [vmem:[%s1760] sm:$0xff]
        %v1762 = vld [vmem:[%s1760 + $0x8] sm:$0xff]
        %v1763 = vld [vmem:[%s1760 + $0x10] sm:$0xff]
        %v1764 = vld [vmem:[%s1760 + $0x18] sm:$0xff]
        %v1765 = vld [vmem:[%s1760 + $0x20] sm:$0xff]
        %v1766 = vld [vmem:[%s1760 + $0x28] sm:$0xff]
        %v1767 = vld [vmem:[%s1760 + $0x30] sm:$0xff]
        %v1768 = vld [vmem:[%s1760 + $0x38] sm:$0xff]
        %v1769 = vld [vmem:[%s1760 + $0x40] sm:$0xff]
        %v1770 = vld [vmem:[%s1760 + $0x48] sm:$0xff]
        %v1771 = vld [vmem:[%s1760 + $0x50] sm:$0xff]
        %v1772 = vld [vmem:[%s1760 + $0x58] sm:$0xff]
        %v1773 = vld [vmem:[%s1760 + $0x60] sm:$0xff]
        %v1774 = vld [vmem:[%s1760 + $0x68] sm:$0xff]
        %v1775 = vld [vmem:[%s1760 + $0x70] sm:$0xff]
        %v1776 = vld [vmem:[%s1760 + $0x78] sm:$0xff]
        %v1777 = vld [vmem:[%s1760 + $0x80] sm:$0xff]
        %v1778 = vld [vmem:[%s1760 + $0x88] sm:$0xff]
        %v1779 = vld [vmem:[%s1760 + $0x90] sm:$0xff]
        %v1780 = vld [vmem:[%s1760 + $0x98] sm:$0xff]
        %v1781 = vld [vmem:[%s1760 + $0xa0] sm:$0xff]
        %v1782 = vld [vmem:[%s1760 + $0xa8] sm:$0xff]
        %v1783 = vld [vmem:[%s1760 + $0xb0] sm:$0xff]
        %v1784 = vld [vmem:[%s1760 + $0xb8] sm:$0xff]
        %v1785 = vld [vmem:[%s1760 + $0xc0] sm:$0xff]
        %v1786 = vld [vmem:[%s1760 + $0xc8] sm:$0xff]
        %v1787 = vld [vmem:[%s1760 + $0xd0] sm:$0xff]
        %v1788 = vld [vmem:[%s1760 + $0xd8] sm:$0xff]
        %v1789 = vld [vmem:[%s1760 + $0xe0] sm:$0xff]
        %v1790 = vld [vmem:[%s1760 + $0xe8] sm:$0xff]
        %v1791 = vld [vmem:[%s1760 + $0xf0] sm:$0xff]
        %v1792 = vld [vmem:[%s1760 + $0xf8] sm:$0xff]
        %v1793 = vld [vmem:[%s1760 + $0x100] sm:$0xff]
        %v1794 = vld [vmem:[%s1760 + $0x108] sm:$0xff]
        %v1795 = vld [vmem:[%s1760 + $0x110] sm:$0xff]
        %v1796 = vld [vmem:[%s1760 + $0x118] sm:$0xff]
        %v1797 = vld [vmem:[%s1760 + $0x120] sm:$0xff]
        %v1798 = vld [vmem:[%s1760 + $0x128] sm:$0xff]
        %v1799 = vld [vmem:[%s1760 + $0x130] sm:$0xff]
        %v1800 = vld [vmem:[%s1760 + $0x138] sm:$0xff]
        %v1801 = vld [vmem:[%s1760 + $0x140] sm:$0xff]
        %v1802 = vld [vmem:[%s1760 + $0x148] sm:$0xff]
        %v1803 = vld [vmem:[%s1760 + $0x150] sm:$0xff]
        %v1804 = vld [vmem:[%s1760 + $0x158] sm:$0xff]
        %v1805 = vld [vmem:[%s1760 + $0x160] sm:$0xff]
        %v1806 = vld [vmem:[%s1760 + $0x168] sm:$0xff]
        %v1807 = vld [vmem:[%s1760 + $0x170] sm:$0xff]
        %v1808 = vld [vmem:[%s1760 + $0x178] sm:$0xff]
        %v1809 = vld [vmem:[%s1760 + $0x180] sm:$0xff]
        %v1810 = vld [vmem:[%s1760 + $0x188] sm:$0xff]
        %v1811 = vld [vmem:[%s1760 + $0x190] sm:$0xff]
        %v1812 = vld [vmem:[%s1760 + $0x198] sm:$0xff]
        %v1813 = vld [vmem:[%s1760 + $0x1a0] sm:$0xff]
        %v1814 = vld [vmem:[%s1760 + $0x1a8] sm:$0xff]
        %v1815 = vld [vmem:[%s1760 + $0x1b0] sm:$0xff]
        %v1816 = vld [vmem:[%s1760 + $0x1b8] sm:$0xff]
        %v1817 = vld [vmem:[%s1760 + $0x1c0] sm:$0xff]
        %v1818 = vld [vmem:[%s1760 + $0x1c8] sm:$0xff]
        %v1819 = vld [vmem:[%s1760 + $0x1d0] sm:$0xff]
        %v1820 = vld [vmem:[%s1760 + $0x1d8] sm:$0xff]
        %v1821 = vld [vmem:[%s1760 + $0x1e0] sm:$0xff]
        %v1822 = vld [vmem:[%s1760 + $0x1e8] sm:$0xff]
        %v1823 = vld [vmem:[%s1760 + $0x1f0] sm:$0xff]
        %v1824 = vld [vmem:[%s1760 + $0x1f8] sm:$0xff]
        %v1825 = vpack.c.bf16 %v1762, %v1761
        %v1826 = vpack.c.bf16 %v1764, %v1763
        %v1827 = vpack.c.bf16 %v1766, %v1765
        %v1828 = vpack.c.bf16 %v1768, %v1767
        %v1829 = vpack.c.bf16 %v1770, %v1769
        %v1830 = vpack.c.bf16 %v1772, %v1771
        %v1831 = vpack.c.bf16 %v1774, %v1773
        %v1832 = vpack.c.bf16 %v1776, %v1775
        %v1833 = vpack.c.bf16 %v1778, %v1777
        %v1834 = vpack.c.bf16 %v1780, %v1779
        %v1835 = vpack.c.bf16 %v1782, %v1781
        %v1836 = vpack.c.bf16 %v1784, %v1783
        %v1837 = vpack.c.bf16 %v1786, %v1785
        %v1838 = vpack.c.bf16 %v1788, %v1787
        %v1839 = vpack.c.bf16 %v1790, %v1789
        %v1840 = vpack.c.bf16 %v1792, %v1791
        %v1841 = vpack.c.bf16 %v1794, %v1793
        %v1842 = vpack.c.bf16 %v1796, %v1795
        %v1843 = vpack.c.bf16 %v1798, %v1797
        %v1844 = vpack.c.bf16 %v1800, %v1799
        %v1845 = vpack.c.bf16 %v1802, %v1801
        %v1846 = vpack.c.bf16 %v1804, %v1803
        %v1847 = vpack.c.bf16 %v1806, %v1805
        %v1848 = vpack.c.bf16 %v1808, %v1807
        %v1849 = vpack.c.bf16 %v1810, %v1809
        %v1850 = vpack.c.bf16 %v1812, %v1811
        %v1851 = vpack.c.bf16 %v1814, %v1813
        %v1852 = vpack.c.bf16 %v1816, %v1815
        %v1853 = vpack.c.bf16 %v1818, %v1817
        %v1854 = vpack.c.bf16 %v1820, %v1819
        %v1855 = vpack.c.bf16 %v1822, %v1821
        %v1856 = vpack.c.bf16 %v1824, %v1823
        %s1857 = scalar_lea.vmem %s1, 24
        %v1858 = vld [vmem:[%s1857] sm:$0xf]
        %v1859 = vld [vmem:[%s1857 + $0x4] sm:$0x3]
        %v1862 = vunpack.c.l.b16 %v1858
        %v1863 = vunpack.c.l.b16 %v1859
        %v1864 = vpack.c.b16 %v1863, %v1862
        %v1866 = vsel %vm418, %v1825, 0
        %v1869 = vsel %vm418, %v1826, 0
        %v1872 = vsel %vm418, %v1827, 0
        %v1875 = vsel %vm418, %v1828, 0
        %v1878 = vsel %vm418, %v1829, 0
        %v1881 = vsel %vm418, %v1830, 0
        %v1884 = vsel %vm418, %v1831, 0
        %v1887 = vsel %vm418, %v1832, 0
        %v1890 = vsel %vm418, %v1833, 0
        %v1893 = vsel %vm418, %v1834, 0
        %v1896 = vsel %vm418, %v1835, 0
        %v1899 = vsel %vm418, %v1836, 0
        %v1902 = vsel %vm418, %v1837, 0
        %v1905 = vsel %vm418, %v1838, 0
        %v1908 = vsel %vm418, %v1839, 0
        %v1911 = vsel %vm418, %v1840, 0
        %v1914 = vsel %vm418, %v1841, 0
        %v1917 = vsel %vm418, %v1842, 0
        %v1920 = vsel %vm418, %v1843, 0
        %v1923 = vsel %vm418, %v1844, 0
        %v1926 = vsel %vm418, %v1845, 0
        %v1929 = vsel %vm418, %v1846, 0
        %v1932 = vsel %vm418, %v1847, 0
        %v1935 = vsel %vm418, %v1848, 0
        %v1938 = vsel %vm418, %v1849, 0
        %v1941 = vsel %vm418, %v1850, 0
        %v1944 = vsel %vm418, %v1851, 0
        %v1947 = vsel %vm418, %v1852, 0
        %v1950 = vsel %vm418, %v1853, 0
        %v1953 = vsel %vm418, %v1854, 0
        %v1956 = vsel %vm418, %v1855, 0
        %v1959 = vsel %vm418, %v1856, 0
        %v1962 = vsel %vm515, %v1864, 0
        %1964 = vmatprep.subr.bf16.mxu0 0
        %1965 = vmatpush1.bf16.msra.mxu0 0
        %1966 = vmatprep.subr.bf16.mxu0 0
        %1967 = vmatpush1.bf16.msra.mxu0 0
        %1968 = vmatprep.subr.bf16.mxu0 0
        %1969 = vmatpush1.bf16.msra.mxu0 0
        %1970 = vmatprep.subr.bf16.mxu0 0
        %1971 = vmatpush1.bf16.msra.mxu0 0
        %1972 = vmatprep.subr.bf16.mxu0 0
        %1973 = vmatpush1.bf16.msra.mxu0 0
        %1974 = vmatprep.subr.bf16.mxu0 0
        %1975 = vmatpush1.bf16.msra.mxu0 0
        %1976 = vmatprep.subr.bf16.mxu0 0
        %1977 = vmatpush1.bf16.msra.mxu0 0
        %1978 = vmatprep.subr.bf16.mxu0 0
        %1979 = vmatpush1.bf16.msra.mxu0 %v1962
        %1980 = vmatprep.subr.bf16.mxu0 0
        %1981 = vmatpush2.bf16.msra.mxu0 0
        %1982 = vmatprep.subr.bf16.mxu0 0
        %1983 = vmatpush2.bf16.msra.mxu0 0
        %1984 = vmatprep.subr.bf16.mxu0 0
        %1985 = vmatpush2.bf16.msra.mxu0 0
        %1986 = vmatprep.subr.bf16.mxu0 0
        %1987 = vmatpush2.bf16.msra.mxu0 0
        %1988 = vmatprep.subr.bf16.mxu0 0
        %1989 = vmatpush2.bf16.msra.mxu0 0
        %1990 = vmatprep.subr.bf16.mxu0 0
        %1991 = vmatpush2.bf16.msra.mxu0 0
        %1992 = vmatprep.subr.bf16.mxu0 0
        %1993 = vmatpush2.bf16.msra.mxu0 0
        %1994 = vmatprep.subr.bf16.mxu0 0
        %1995 = vmatpush2.bf16.msra.mxu0 0
        %1996 = vmatprep.mubr.bf16.mxu0 0
        %1997 = vmatmul.mubr.bf16.gmra.mxu0 %v1866
        %v1998 = vpop.f32.mrf.mxu0
        %v1999 = vadd.f32 0.0, %v1998
        %v2000 = vpop.f32.mrf.mxu0
        %v2001 = vpop.f32.mrf.mxu0
        %v2002 = vadd.f32 0.0, %v2001
        %v2003 = vpop.f32.mrf.mxu0
        %2004 = vmatprep.mubr.bf16.mxu0 0
        %2005 = vmatmul.mubr.bf16.gmra.mxu0 %v1869
        %v2006 = vpop.f32.mrf.mxu0
        %v2007 = vadd.f32 0.0, %v2006
        %v2008 = vpop.f32.mrf.mxu0
        %v2009 = vpop.f32.mrf.mxu0
        %v2010 = vadd.f32 0.0, %v2009
        %v2011 = vpop.f32.mrf.mxu0
        %2012 = vmatprep.mubr.bf16.mxu0 0
        %2013 = vmatmul.mubr.bf16.gmra.mxu0 %v1872
        %v2014 = vpop.f32.mrf.mxu0
        %v2015 = vadd.f32 0.0, %v2014
        %v2016 = vpop.f32.mrf.mxu0
        %v2017 = vpop.f32.mrf.mxu0
        %v2018 = vadd.f32 0.0, %v2017
        %v2019 = vpop.f32.mrf.mxu0
        %2020 = vmatprep.mubr.bf16.mxu0 0
        %2021 = vmatmul.mubr.bf16.gmra.mxu0 %v1875
        %v2022 = vpop.f32.mrf.mxu0
        %v2023 = vadd.f32 0.0, %v2022
        %v2024 = vpop.f32.mrf.mxu0
        %v2025 = vpop.f32.mrf.mxu0
        %v2026 = vadd.f32 0.0, %v2025
        %v2027 = vpop.f32.mrf.mxu0
        %2028 = vmatprep.mubr.bf16.mxu0 0
        %2029 = vmatmul.mubr.bf16.gmra.mxu0 %v1878
        %v2030 = vpop.f32.mrf.mxu0
        %v2031 = vadd.f32 0.0, %v2030
        %v2032 = vpop.f32.mrf.mxu0
        %v2033 = vpop.f32.mrf.mxu0
        %v2034 = vadd.f32 0.0, %v2033
        %v2035 = vpop.f32.mrf.mxu0
        %2036 = vmatprep.mubr.bf16.mxu0 0
        %2037 = vmatmul.mubr.bf16.gmra.mxu0 %v1881
        %v2038 = vpop.f32.mrf.mxu0
        %v2039 = vadd.f32 0.0, %v2038
        %v2040 = vpop.f32.mrf.mxu0
        %v2041 = vpop.f32.mrf.mxu0
        %v2042 = vadd.f32 0.0, %v2041
        %v2043 = vpop.f32.mrf.mxu0
        %2044 = vmatprep.mubr.bf16.mxu0 0
        %2045 = vmatmul.mubr.bf16.gmra.mxu0 %v1884
        %v2046 = vpop.f32.mrf.mxu0
        %v2047 = vadd.f32 0.0, %v2046
        %v2048 = vpop.f32.mrf.mxu0
        %v2049 = vpop.f32.mrf.mxu0
        %v2050 = vadd.f32 0.0, %v2049
        %v2051 = vpop.f32.mrf.mxu0
        %2052 = vmatprep.mubr.bf16.mxu0 0
        %2053 = vmatmul.mubr.bf16.gmra.mxu0 %v1887
        %v2054 = vpop.f32.mrf.mxu0
        %v2055 = vadd.f32 0.0, %v2054
        %v2056 = vpop.f32.mrf.mxu0
        %v2057 = vpop.f32.mrf.mxu0
        %v2058 = vadd.f32 0.0, %v2057
        %v2059 = vpop.f32.mrf.mxu0
        %2060 = vmatprep.mubr.bf16.mxu0 0
        %2061 = vmatmul.mubr.bf16.gmra.mxu0 %v1890
        %v2062 = vpop.f32.mrf.mxu0
        %v2063 = vadd.f32 0.0, %v2062
        %v2064 = vpop.f32.mrf.mxu0
        %v2065 = vpop.f32.mrf.mxu0
        %v2066 = vadd.f32 0.0, %v2065
        %v2067 = vpop.f32.mrf.mxu0
        %2068 = vmatprep.mubr.bf16.mxu0 0
        %2069 = vmatmul.mubr.bf16.gmra.mxu0 %v1893
        %v2070 = vpop.f32.mrf.mxu0
        %v2071 = vadd.f32 0.0, %v2070
        %v2072 = vpop.f32.mrf.mxu0
        %v2073 = vpop.f32.mrf.mxu0
        %v2074 = vadd.f32 0.0, %v2073
        %v2075 = vpop.f32.mrf.mxu0
        %2076 = vmatprep.mubr.bf16.mxu0 0
        %2077 = vmatmul.mubr.bf16.gmra.mxu0 %v1896
        %v2078 = vpop.f32.mrf.mxu0
        %v2079 = vadd.f32 0.0, %v2078
        %v2080 = vpop.f32.mrf.mxu0
        %v2081 = vpop.f32.mrf.mxu0
        %v2082 = vadd.f32 0.0, %v2081
        %v2083 = vpop.f32.mrf.mxu0
        %2084 = vmatprep.mubr.bf16.mxu0 0
        %2085 = vmatmul.mubr.bf16.gmra.mxu0 %v1899
        %v2086 = vpop.f32.mrf.mxu0
        %v2087 = vadd.f32 0.0, %v2086
        %v2088 = vpop.f32.mrf.mxu0
        %v2089 = vpop.f32.mrf.mxu0
        %v2090 = vadd.f32 0.0, %v2089
        %v2091 = vpop.f32.mrf.mxu0
        %2092 = vmatprep.mubr.bf16.mxu0 0
        %2093 = vmatmul.mubr.bf16.gmra.mxu0 %v1902
        %v2094 = vpop.f32.mrf.mxu0
        %v2095 = vadd.f32 0.0, %v2094
        %v2096 = vpop.f32.mrf.mxu0
        %v2097 = vpop.f32.mrf.mxu0
        %v2098 = vadd.f32 0.0, %v2097
        %v2099 = vpop.f32.mrf.mxu0
        %2100 = vmatprep.mubr.bf16.mxu0 0
        %2101 = vmatmul.mubr.bf16.gmra.mxu0 %v1905
        %v2102 = vpop.f32.mrf.mxu0
        %v2103 = vadd.f32 0.0, %v2102
        %v2104 = vpop.f32.mrf.mxu0
        %v2105 = vpop.f32.mrf.mxu0
        %v2106 = vadd.f32 0.0, %v2105
        %v2107 = vpop.f32.mrf.mxu0
        %2108 = vmatprep.mubr.bf16.mxu0 0
        %2109 = vmatmul.mubr.bf16.gmra.mxu0 %v1908
        %v2110 = vpop.f32.mrf.mxu0
        %v2111 = vadd.f32 0.0, %v2110
        %v2112 = vpop.f32.mrf.mxu0
        %v2113 = vpop.f32.mrf.mxu0
        %v2114 = vadd.f32 0.0, %v2113
        %v2115 = vpop.f32.mrf.mxu0
        %2116 = vmatprep.mubr.bf16.mxu0 0
        %2117 = vmatmul.mubr.bf16.gmra.mxu0 %v1911
        %v2118 = vpop.f32.mrf.mxu0
        %v2119 = vadd.f32 0.0, %v2118
        %v2120 = vpop.f32.mrf.mxu0
        %v2121 = vpop.f32.mrf.mxu0
        %v2122 = vadd.f32 0.0, %v2121
        %v2123 = vpop.f32.mrf.mxu0
        %2124 = vmatprep.mubr.bf16.mxu0 0
        %2125 = vmatmul.mubr.bf16.gmra.mxu0 %v1914
        %v2126 = vpop.f32.mrf.mxu0
        %v2127 = vadd.f32 0.0, %v2126
        %v2128 = vpop.f32.mrf.mxu0
        %v2129 = vpop.f32.mrf.mxu0
        %v2130 = vadd.f32 0.0, %v2129
        %v2131 = vpop.f32.mrf.mxu0
        %2132 = vmatprep.mubr.bf16.mxu0 0
        %2133 = vmatmul.mubr.bf16.gmra.mxu0 %v1917
        %v2134 = vpop.f32.mrf.mxu0
        %v2135 = vadd.f32 0.0, %v2134
        %v2136 = vpop.f32.mrf.mxu0
        %v2137 = vpop.f32.mrf.mxu0
        %v2138 = vadd.f32 0.0, %v2137
        %v2139 = vpop.f32.mrf.mxu0
        %2140 = vmatprep.mubr.bf16.mxu0 0
        %2141 = vmatmul.mubr.bf16.gmra.mxu0 %v1920
        %v2142 = vpop.f32.mrf.mxu0
        %v2143 = vadd.f32 0.0, %v2142
        %v2144 = vpop.f32.mrf.mxu0
        %v2145 = vpop.f32.mrf.mxu0
        %v2146 = vadd.f32 0.0, %v2145
        %v2147 = vpop.f32.mrf.mxu0
        %2148 = vmatprep.mubr.bf16.mxu0 0
        %2149 = vmatmul.mubr.bf16.gmra.mxu0 %v1923
        %v2150 = vpop.f32.mrf.mxu0
        %v2151 = vadd.f32 0.0, %v2150
        %v2152 = vpop.f32.mrf.mxu0
        %v2153 = vpop.f32.mrf.mxu0
        %v2154 = vadd.f32 0.0, %v2153
        %v2155 = vpop.f32.mrf.mxu0
        %2156 = vmatprep.mubr.bf16.mxu0 0
        %2157 = vmatmul.mubr.bf16.gmra.mxu0 %v1926
        %v2158 = vpop.f32.mrf.mxu0
        %v2159 = vadd.f32 0.0, %v2158
        %v2160 = vpop.f32.mrf.mxu0
        %v2161 = vpop.f32.mrf.mxu0
        %v2162 = vadd.f32 0.0, %v2161
        %v2163 = vpop.f32.mrf.mxu0
        %2164 = vmatprep.mubr.bf16.mxu0 0
        %2165 = vmatmul.mubr.bf16.gmra.mxu0 %v1929
        %v2166 = vpop.f32.mrf.mxu0
        %v2167 = vadd.f32 0.0, %v2166
        %v2168 = vpop.f32.mrf.mxu0
        %v2169 = vpop.f32.mrf.mxu0
        %v2170 = vadd.f32 0.0, %v2169
        %v2171 = vpop.f32.mrf.mxu0
        %2172 = vmatprep.mubr.bf16.mxu0 0
        %2173 = vmatmul.mubr.bf16.gmra.mxu0 %v1932
        %v2174 = vpop.f32.mrf.mxu0
        %v2175 = vadd.f32 0.0, %v2174
        %v2176 = vpop.f32.mrf.mxu0
        %v2177 = vpop.f32.mrf.mxu0
        %v2178 = vadd.f32 0.0, %v2177
        %v2179 = vpop.f32.mrf.mxu0
        %2180 = vmatprep.mubr.bf16.mxu0 0
        %2181 = vmatmul.mubr.bf16.gmra.mxu0 %v1935
        %v2182 = vpop.f32.mrf.mxu0
        %v2183 = vadd.f32 0.0, %v2182
        %v2184 = vpop.f32.mrf.mxu0
        %v2185 = vpop.f32.mrf.mxu0
        %v2186 = vadd.f32 0.0, %v2185
        %v2187 = vpop.f32.mrf.mxu0
        %2188 = vmatprep.mubr.bf16.mxu0 0
        %2189 = vmatmul.mubr.bf16.gmra.mxu0 %v1938
        %v2190 = vpop.f32.mrf.mxu0
        %v2191 = vadd.f32 0.0, %v2190
        %v2192 = vpop.f32.mrf.mxu0
        %v2193 = vpop.f32.mrf.mxu0
        %v2194 = vadd.f32 0.0, %v2193
        %v2195 = vpop.f32.mrf.mxu0
        %2196 = vmatprep.mubr.bf16.mxu0 0
        %2197 = vmatmul.mubr.bf16.gmra.mxu0 %v1941
        %v2198 = vpop.f32.mrf.mxu0
        %v2199 = vadd.f32 0.0, %v2198
        %v2200 = vpop.f32.mrf.mxu0
        %v2201 = vpop.f32.mrf.mxu0
        %v2202 = vadd.f32 0.0, %v2201
        %v2203 = vpop.f32.mrf.mxu0
        %2204 = vmatprep.mubr.bf16.mxu0 0
        %2205 = vmatmul.mubr.bf16.gmra.mxu0 %v1944
        %v2206 = vpop.f32.mrf.mxu0
        %v2207 = vadd.f32 0.0, %v2206
        %v2208 = vpop.f32.mrf.mxu0
        %v2209 = vpop.f32.mrf.mxu0
        %v2210 = vadd.f32 0.0, %v2209
        %v2211 = vpop.f32.mrf.mxu0
        %2212 = vmatprep.mubr.bf16.mxu0 0
        %2213 = vmatmul.mubr.bf16.gmra.mxu0 %v1947
        %v2214 = vpop.f32.mrf.mxu0
        %v2215 = vadd.f32 0.0, %v2214
        %v2216 = vpop.f32.mrf.mxu0
        %v2217 = vpop.f32.mrf.mxu0
        %v2218 = vadd.f32 0.0, %v2217
        %v2219 = vpop.f32.mrf.mxu0
        %2220 = vmatprep.mubr.bf16.mxu0 0
        %2221 = vmatmul.mubr.bf16.gmra.mxu0 %v1950
        %v2222 = vpop.f32.mrf.mxu0
        %v2223 = vadd.f32 0.0, %v2222
        %v2224 = vpop.f32.mrf.mxu0
        %v2225 = vpop.f32.mrf.mxu0
        %v2226 = vadd.f32 0.0, %v2225
        %v2227 = vpop.f32.mrf.mxu0
        %2228 = vmatprep.mubr.bf16.mxu0 0
        %2229 = vmatmul.mubr.bf16.gmra.mxu0 %v1953
        %v2230 = vpop.f32.mrf.mxu0
        %v2231 = vadd.f32 0.0, %v2230
        %v2232 = vpop.f32.mrf.mxu0
        %v2233 = vpop.f32.mrf.mxu0
        %v2234 = vadd.f32 0.0, %v2233
        %v2235 = vpop.f32.mrf.mxu0
        %2236 = vmatprep.mubr.bf16.mxu0 0
        %2237 = vmatmul.mubr.bf16.gmra.mxu0 %v1956
        %v2238 = vpop.f32.mrf.mxu0
        %v2239 = vadd.f32 0.0, %v2238
        %v2240 = vpop.f32.mrf.mxu0
        %v2241 = vpop.f32.mrf.mxu0
        %v2242 = vadd.f32 0.0, %v2241
        %v2243 = vpop.f32.mrf.mxu0
        %2244 = vmatprep.mubr.bf16.mxu0 0
        %2245 = vmatmul.mubr.bf16.gmra.mxu0 %v1959
        %v2246 = vpop.f32.mrf.mxu0
        %v2247 = vadd.f32 0.0, %v2246
        %v2248 = vpop.f32.mrf.mxu0
        %v2249 = vpop.f32.mrf.mxu0
        %v2250 = vadd.f32 0.0, %v2249
        %v2251 = vpop.f32.mrf.mxu0
        %2252 = vdwg.mxu0
        %v2253 = vadd.f32 %v1695, %v1999
        %v2254 = vadd.f32 %v1696, %v2002
        %v2255 = vadd.f32 %v1697, %v2007
        %v2256 = vadd.f32 %v1698, %v2010
        %v2257 = vadd.f32 %v1699, %v2015
        %v2258 = vadd.f32 %v1700, %v2018
        %v2259 = vadd.f32 %v1701, %v2023
        %v2260 = vadd.f32 %v1702, %v2026
        %v2261 = vadd.f32 %v1703, %v2031
        %v2262 = vadd.f32 %v1704, %v2034
        %v2263 = vadd.f32 %v1705, %v2039
        %v2264 = vadd.f32 %v1706, %v2042
        %v2265 = vadd.f32 %v1707, %v2047
        %v2266 = vadd.f32 %v1708, %v2050
        %v2267 = vadd.f32 %v1709, %v2055
        %v2268 = vadd.f32 %v1710, %v2058
        %v2269 = vadd.f32 %v1711, %v2063
        %v2270 = vadd.f32 %v1712, %v2066
        %v2271 = vadd.f32 %v1713, %v2071
        %v2272 = vadd.f32 %v1714, %v2074
        %v2273 = vadd.f32 %v1715, %v2079
        %v2274 = vadd.f32 %v1716, %v2082
        %v2275 = vadd.f32 %v1717, %v2087
        %v2276 = vadd.f32 %v1718, %v2090
        %v2277 = vadd.f32 %v1719, %v2095
        %v2278 = vadd.f32 %v1720, %v2098
        %v2279 = vadd.f32 %v1721, %v2103
        %v2280 = vadd.f32 %v1722, %v2106
        %v2281 = vadd.f32 %v1723, %v2111
        %v2282 = vadd.f32 %v1724, %v2114
        %v2283 = vadd.f32 %v1725, %v2119
        %v2284 = vadd.f32 %v1726, %v2122
        %v2285 = vadd.f32 %v1727, %v2127
        %v2286 = vadd.f32 %v1728, %v2130
        %v2287 = vadd.f32 %v1729, %v2135
        %v2288 = vadd.f32 %v1730, %v2138
        %v2289 = vadd.f32 %v1731, %v2143
        %v2290 = vadd.f32 %v1732, %v2146
        %v2291 = vadd.f32 %v1733, %v2151
        %v2292 = vadd.f32 %v1734, %v2154
        %v2293 = vadd.f32 %v1735, %v2159
        %v2294 = vadd.f32 %v1736, %v2162
        %v2295 = vadd.f32 %v1737, %v2167
        %v2296 = vadd.f32 %v1738, %v2170
        %v2297 = vadd.f32 %v1739, %v2175
        %v2298 = vadd.f32 %v1740, %v2178
        %v2299 = vadd.f32 %v1741, %v2183
        %v2300 = vadd.f32 %v1742, %v2186
        %v2301 = vadd.f32 %v1743, %v2191
        %v2302 = vadd.f32 %v1744, %v2194
        %v2303 = vadd.f32 %v1745, %v2199
        %v2304 = vadd.f32 %v1746, %v2202
        %v2305 = vadd.f32 %v1747, %v2207
        %v2306 = vadd.f32 %v1748, %v2210
        %v2307 = vadd.f32 %v1749, %v2215
        %v2308 = vadd.f32 %v1750, %v2218
        %v2309 = vadd.f32 %v1751, %v2223
        %v2310 = vadd.f32 %v1752, %v2226
        %v2311 = vadd.f32 %v1753, %v2231
        %v2312 = vadd.f32 %v1754, %v2234
        %v2313 = vadd.f32 %v1755, %v2239
        %v2314 = vadd.f32 %v1756, %v2242
        %v2315 = vadd.f32 %v1757, %v2247
        %v2316 = vadd.f32 %v1758, %v2250
        %v2317 = vld [vmem:[%s2] sm:$0x1]
        %v2319 = vlaneseq
        %v2320 = vshrl.u32 %v2319, 7
        %v2321 = vsub.s32 0, %v2320
        %v2322 = vrot.slane %v2317, %v2321
        %v2324 = vmul.f32 %v2253, %v2322
        %v2325 = vmul.f32 %v2254, %v2322
        %v2326 = vmul.f32 %v2255, %v2322
        %v2327 = vmul.f32 %v2256, %v2322
        %v2328 = vmul.f32 %v2257, %v2322
        %v2329 = vmul.f32 %v2258, %v2322
        %v2330 = vmul.f32 %v2259, %v2322
        %v2331 = vmul.f32 %v2260, %v2322
        %v2332 = vmul.f32 %v2261, %v2322
        %v2333 = vmul.f32 %v2262, %v2322
        %v2334 = vmul.f32 %v2263, %v2322
        %v2335 = vmul.f32 %v2264, %v2322
        %v2336 = vmul.f32 %v2265, %v2322
        %v2337 = vmul.f32 %v2266, %v2322
        %v2338 = vmul.f32 %v2267, %v2322
        %v2339 = vmul.f32 %v2268, %v2322
        %v2340 = vmul.f32 %v2269, %v2322
        %v2341 = vmul.f32 %v2270, %v2322
        %v2342 = vmul.f32 %v2271, %v2322
        %v2343 = vmul.f32 %v2272, %v2322
        %v2344 = vmul.f32 %v2273, %v2322
        %v2345 = vmul.f32 %v2274, %v2322
        %v2346 = vmul.f32 %v2275, %v2322
        %v2347 = vmul.f32 %v2276, %v2322
        %v2348 = vmul.f32 %v2277, %v2322
        %v2349 = vmul.f32 %v2278, %v2322
        %v2350 = vmul.f32 %v2279, %v2322
        %v2351 = vmul.f32 %v2280, %v2322
        %v2352 = vmul.f32 %v2281, %v2322
        %v2353 = vmul.f32 %v2282, %v2322
        %v2354 = vmul.f32 %v2283, %v2322
        %v2355 = vmul.f32 %v2284, %v2322
        %v2356 = vmul.f32 %v2285, %v2322
        %v2357 = vmul.f32 %v2286, %v2322
        %v2358 = vmul.f32 %v2287, %v2322
        %v2359 = vmul.f32 %v2288, %v2322
        %v2360 = vmul.f32 %v2289, %v2322
        %v2361 = vmul.f32 %v2290, %v2322
        %v2362 = vmul.f32 %v2291, %v2322
        %v2363 = vmul.f32 %v2292, %v2322
        %v2364 = vmul.f32 %v2293, %v2322
        %v2365 = vmul.f32 %v2294, %v2322
        %v2366 = vmul.f32 %v2295, %v2322
        %v2367 = vmul.f32 %v2296, %v2322
        %v2368 = vmul.f32 %v2297, %v2322
        %v2369 = vmul.f32 %v2298, %v2322
        %v2370 = vmul.f32 %v2299, %v2322
        %v2371 = vmul.f32 %v2300, %v2322
        %v2372 = vmul.f32 %v2301, %v2322
        %v2373 = vmul.f32 %v2302, %v2322
        %v2374 = vmul.f32 %v2303, %v2322
        %v2375 = vmul.f32 %v2304, %v2322
        %v2376 = vmul.f32 %v2305, %v2322
        %v2377 = vmul.f32 %v2306, %v2322
        %v2378 = vmul.f32 %v2307, %v2322
        %v2379 = vmul.f32 %v2308, %v2322
        %v2380 = vmul.f32 %v2309, %v2322
        %v2381 = vmul.f32 %v2310, %v2322
        %v2382 = vmul.f32 %v2311, %v2322
        %v2383 = vmul.f32 %v2312, %v2322
        %v2384 = vmul.f32 %v2313, %v2322
        %v2385 = vmul.f32 %v2314, %v2322
        %v2386 = vmul.f32 %v2315, %v2322
        %v2387 = vmul.f32 %v2316, %v2322
        %v2388 = vld [vmem:[%s3] sm:$0x1]
        %v2390 = vlaneseq
        %v2391 = vshrl.u32 %v2390, 7
        %v2392 = vsub.s32 0, %v2391
        %v2393 = vrot.slane %v2388, %v2392
        %v2395 = vadd.f32 %v2324, %v2393
        %v2396 = vadd.f32 %v2325, %v2393
        %v2397 = vadd.f32 %v2326, %v2393
        %v2398 = vadd.f32 %v2327, %v2393
        %v2399 = vadd.f32 %v2328, %v2393
        %v2400 = vadd.f32 %v2329, %v2393
        %v2401 = vadd.f32 %v2330, %v2393
        %v2402 = vadd.f32 %v2331, %v2393
        %v2403 = vadd.f32 %v2332, %v2393
        %v2404 = vadd.f32 %v2333, %v2393
        %v2405 = vadd.f32 %v2334, %v2393
        %v2406 = vadd.f32 %v2335, %v2393
        %v2407 = vadd.f32 %v2336, %v2393
        %v2408 = vadd.f32 %v2337, %v2393
        %v2409 = vadd.f32 %v2338, %v2393
        %v2410 = vadd.f32 %v2339, %v2393
        %v2411 = vadd.f32 %v2340, %v2393
        %v2412 = vadd.f32 %v2341, %v2393
        %v2413 = vadd.f32 %v2342, %v2393
        %v2414 = vadd.f32 %v2343, %v2393
        %v2415 = vadd.f32 %v2344, %v2393
        %v2416 = vadd.f32 %v2345, %v2393
        %v2417 = vadd.f32 %v2346, %v2393
        %v2418 = vadd.f32 %v2347, %v2393
        %v2419 = vadd.f32 %v2348, %v2393
        %v2420 = vadd.f32 %v2349, %v2393
        %v2421 = vadd.f32 %v2350, %v2393
        %v2422 = vadd.f32 %v2351, %v2393
        %v2423 = vadd.f32 %v2352, %v2393
        %v2424 = vadd.f32 %v2353, %v2393
        %v2425 = vadd.f32 %v2354, %v2393
        %v2426 = vadd.f32 %v2355, %v2393
        %v2427 = vadd.f32 %v2356, %v2393
        %v2428 = vadd.f32 %v2357, %v2393
        %v2429 = vadd.f32 %v2358, %v2393
        %v2430 = vadd.f32 %v2359, %v2393
        %v2431 = vadd.f32 %v2360, %v2393
        %v2432 = vadd.f32 %v2361, %v2393
        %v2433 = vadd.f32 %v2362, %v2393
        %v2434 = vadd.f32 %v2363, %v2393
        %v2435 = vadd.f32 %v2364, %v2393
        %v2436 = vadd.f32 %v2365, %v2393
        %v2437 = vadd.f32 %v2366, %v2393
        %v2438 = vadd.f32 %v2367, %v2393
        %v2439 = vadd.f32 %v2368, %v2393
        %v2440 = vadd.f32 %v2369, %v2393
        %v2441 = vadd.f32 %v2370, %v2393
        %v2442 = vadd.f32 %v2371, %v2393
        %v2443 = vadd.f32 %v2372, %v2393
        %v2444 = vadd.f32 %v2373, %v2393
        %v2445 = vadd.f32 %v2374, %v2393
        %v2446 = vadd.f32 %v2375, %v2393
        %v2447 = vadd.f32 %v2376, %v2393
        %v2448 = vadd.f32 %v2377, %v2393
        %v2449 = vadd.f32 %v2378, %v2393
        %v2450 = vadd.f32 %v2379, %v2393
        %v2451 = vadd.f32 %v2380, %v2393
        %v2452 = vadd.f32 %v2381, %v2393
        %v2453 = vadd.f32 %v2382, %v2393
        %v2454 = vadd.f32 %v2383, %v2393
        %v2455 = vadd.f32 %v2384, %v2393
        %v2456 = vadd.f32 %v2385, %v2393
        %v2457 = vadd.f32 %v2386, %v2393
        %v2458 = vadd.f32 %v2387, %v2393
        %v2459 = vmax.f32 %v2395, 0.0
        %v2460 = vmax.f32 %v2396, 0.0
        %v2461 = vmax.f32 %v2397, 0.0
        %v2462 = vmax.f32 %v2398, 0.0
        %v2463 = vmax.f32 %v2399, 0.0
        %v2464 = vmax.f32 %v2400, 0.0
        %v2465 = vmax.f32 %v2401, 0.0
        %v2466 = vmax.f32 %v2402, 0.0
        %v2467 = vmax.f32 %v2403, 0.0
        %v2468 = vmax.f32 %v2404, 0.0
        %v2469 = vmax.f32 %v2405, 0.0
        %v2470 = vmax.f32 %v2406, 0.0
        %v2471 = vmax.f32 %v2407, 0.0
        %v2472 = vmax.f32 %v2408, 0.0
        %v2473 = vmax.f32 %v2409, 0.0
        %v2474 = vmax.f32 %v2410, 0.0
        %v2475 = vmax.f32 %v2411, 0.0
        %v2476 = vmax.f32 %v2412, 0.0
        %v2477 = vmax.f32 %v2413, 0.0
        %v2478 = vmax.f32 %v2414, 0.0
        %v2479 = vmax.f32 %v2415, 0.0
        %v2480 = vmax.f32 %v2416, 0.0
        %v2481 = vmax.f32 %v2417, 0.0
        %v2482 = vmax.f32 %v2418, 0.0
        %v2483 = vmax.f32 %v2419, 0.0
        %v2484 = vmax.f32 %v2420, 0.0
        %v2485 = vmax.f32 %v2421, 0.0
        %v2486 = vmax.f32 %v2422, 0.0
        %v2487 = vmax.f32 %v2423, 0.0
        %v2488 = vmax.f32 %v2424, 0.0
        %v2489 = vmax.f32 %v2425, 0.0
        %v2490 = vmax.f32 %v2426, 0.0
        %v2491 = vmax.f32 %v2427, 0.0
        %v2492 = vmax.f32 %v2428, 0.0
        %v2493 = vmax.f32 %v2429, 0.0
        %v2494 = vmax.f32 %v2430, 0.0
        %v2495 = vmax.f32 %v2431, 0.0
        %v2496 = vmax.f32 %v2432, 0.0
        %v2497 = vmax.f32 %v2433, 0.0
        %v2498 = vmax.f32 %v2434, 0.0
        %v2499 = vmax.f32 %v2435, 0.0
        %v2500 = vmax.f32 %v2436, 0.0
        %v2501 = vmax.f32 %v2437, 0.0
        %v2502 = vmax.f32 %v2438, 0.0
        %v2503 = vmax.f32 %v2439, 0.0
        %v2504 = vmax.f32 %v2440, 0.0
        %v2505 = vmax.f32 %v2441, 0.0
        %v2506 = vmax.f32 %v2442, 0.0
        %v2507 = vmax.f32 %v2443, 0.0
        %v2508 = vmax.f32 %v2444, 0.0
        %v2509 = vmax.f32 %v2445, 0.0
        %v2510 = vmax.f32 %v2446, 0.0
        %v2511 = vmax.f32 %v2447, 0.0
        %v2512 = vmax.f32 %v2448, 0.0
        %v2513 = vmax.f32 %v2449, 0.0
        %v2514 = vmax.f32 %v2450, 0.0
        %v2515 = vmax.f32 %v2451, 0.0
        %v2516 = vmax.f32 %v2452, 0.0
        %v2517 = vmax.f32 %v2453, 0.0
        %v2518 = vmax.f32 %v2454, 0.0
        %v2519 = vmax.f32 %v2455, 0.0
        %v2520 = vmax.f32 %v2456, 0.0
        %v2521 = vmax.f32 %v2457, 0.0
        %v2522 = vmax.f32 %v2458, 0.0
        %v2523 = vpack.c.bf16 %v2460, %v2459
        %v2524 = vpack.c.bf16 %v2462, %v2461
        %v2525 = vpack.c.bf16 %v2464, %v2463
        %v2526 = vpack.c.bf16 %v2466, %v2465
        %v2527 = vpack.c.bf16 %v2468, %v2467
        %v2528 = vpack.c.bf16 %v2470, %v2469
        %v2529 = vpack.c.bf16 %v2472, %v2471
        %v2530 = vpack.c.bf16 %v2474, %v2473
        %v2531 = vpack.c.bf16 %v2476, %v2475
        %v2532 = vpack.c.bf16 %v2478, %v2477
        %v2533 = vpack.c.bf16 %v2480, %v2479
        %v2534 = vpack.c.bf16 %v2482, %v2481
        %v2535 = vpack.c.bf16 %v2484, %v2483
        %v2536 = vpack.c.bf16 %v2486, %v2485
        %v2537 = vpack.c.bf16 %v2488, %v2487
        %v2538 = vpack.c.bf16 %v2490, %v2489
        %v2539 = vpack.c.bf16 %v2492, %v2491
        %v2540 = vpack.c.bf16 %v2494, %v2493
        %v2541 = vpack.c.bf16 %v2496, %v2495
        %v2542 = vpack.c.bf16 %v2498, %v2497
        %v2543 = vpack.c.bf16 %v2500, %v2499
        %v2544 = vpack.c.bf16 %v2502, %v2501
        %v2545 = vpack.c.bf16 %v2504, %v2503
        %v2546 = vpack.c.bf16 %v2506, %v2505
        %v2547 = vpack.c.bf16 %v2508, %v2507
        %v2548 = vpack.c.bf16 %v2510, %v2509
        %v2549 = vpack.c.bf16 %v2512, %v2511
        %v2550 = vpack.c.bf16 %v2514, %v2513
        %v2551 = vpack.c.bf16 %v2516, %v2515
        %v2552 = vpack.c.bf16 %v2518, %v2517
        %v2553 = vpack.c.bf16 %v2520, %v2519
        %v2554 = vpack.c.bf16 %v2522, %v2521
        %v2587 = vunpack.c.l.b16 %v2523
        %v2588 = vunpack.c.h.b16 %v2523
        %v2589 = vunpack.c.l.b16 %v2524
        %v2590 = vunpack.c.h.b16 %v2524
        %v2591 = vunpack.c.l.b16 %v2525
        %v2592 = vunpack.c.h.b16 %v2525
        %v2593 = vunpack.c.l.b16 %v2526
        %v2594 = vunpack.c.h.b16 %v2526
        %v2595 = vunpack.c.l.b16 %v2527
        %v2596 = vunpack.c.h.b16 %v2527
        %v2597 = vunpack.c.l.b16 %v2528
        %v2598 = vunpack.c.h.b16 %v2528
        %v2599 = vunpack.c.l.b16 %v2529
        %v2600 = vunpack.c.h.b16 %v2529
        %v2601 = vunpack.c.l.b16 %v2530
        %v2602 = vunpack.c.h.b16 %v2530
        %v2603 = vunpack.c.l.b16 %v2531
        %v2604 = vunpack.c.h.b16 %v2531
        %v2605 = vunpack.c.l.b16 %v2532
        %v2606 = vunpack.c.h.b16 %v2532
        %v2607 = vunpack.c.l.b16 %v2533
        %v2608 = vunpack.c.h.b16 %v2533
        %v2609 = vunpack.c.l.b16 %v2534
        %v2610 = vunpack.c.h.b16 %v2534
        %v2611 = vunpack.c.l.b16 %v2535
        %v2612 = vunpack.c.h.b16 %v2535
        %v2613 = vunpack.c.l.b16 %v2536
        %v2614 = vunpack.c.h.b16 %v2536
        %v2615 = vunpack.c.l.b16 %v2537
        %v2616 = vunpack.c.h.b16 %v2537
        %v2617 = vunpack.c.l.b16 %v2538
        %v2618 = vunpack.c.h.b16 %v2538
        %v2619 = vunpack.c.l.b16 %v2539
        %v2620 = vunpack.c.h.b16 %v2539
        %v2621 = vunpack.c.l.b16 %v2540
        %v2622 = vunpack.c.h.b16 %v2540
        %v2623 = vunpack.c.l.b16 %v2541
        %v2624 = vunpack.c.h.b16 %v2541
        %v2625 = vunpack.c.l.b16 %v2542
        %v2626 = vunpack.c.h.b16 %v2542
        %v2627 = vunpack.c.l.b16 %v2543
        %v2628 = vunpack.c.h.b16 %v2543
        %v2629 = vunpack.c.l.b16 %v2544
        %v2630 = vunpack.c.h.b16 %v2544
        %v2631 = vunpack.c.l.b16 %v2545
        %v2632 = vunpack.c.h.b16 %v2545
        %v2633 = vunpack.c.l.b16 %v2546
        %v2634 = vunpack.c.h.b16 %v2546
        %v2635 = vunpack.c.l.b16 %v2547
        %v2636 = vunpack.c.h.b16 %v2547
        %v2637 = vunpack.c.l.b16 %v2548
        %v2638 = vunpack.c.h.b16 %v2548
        %v2639 = vunpack.c.l.b16 %v2549
        %v2640 = vunpack.c.h.b16 %v2549
        %v2641 = vunpack.c.l.b16 %v2550
        %v2642 = vunpack.c.h.b16 %v2550
        %v2643 = vunpack.c.l.b16 %v2551
        %v2644 = vunpack.c.h.b16 %v2551
        %v2645 = vunpack.c.l.b16 %v2552
        %v2646 = vunpack.c.h.b16 %v2552
        %v2647 = vunpack.c.l.b16 %v2553
        %v2648 = vunpack.c.h.b16 %v2553
        %v2649 = vunpack.c.l.b16 %v2554
        %v2650 = vunpack.c.h.b16 %v2554
        %v2651 = vpack.c.b16 %v2587, %v2587
        %v2652 = vpack.c.b16 %v2588, %v2588
        %v2653 = vpack.c.b16 %v2589, %v2589
        %v2654 = vpack.c.b16 %v2590, %v2590
        %v2655 = vpack.c.b16 %v2591, %v2591
        %v2656 = vpack.c.b16 %v2592, %v2592
        %v2657 = vpack.c.b16 %v2593, %v2593
        %v2658 = vpack.c.b16 %v2594, %v2594
        %v2659 = vpack.c.b16 %v2595, %v2595
        %v2660 = vpack.c.b16 %v2596, %v2596
        %v2661 = vpack.c.b16 %v2597, %v2597
        %v2662 = vpack.c.b16 %v2598, %v2598
        %v2663 = vpack.c.b16 %v2599, %v2599
        %v2664 = vpack.c.b16 %v2600, %v2600
        %v2665 = vpack.c.b16 %v2601, %v2601
        %v2666 = vpack.c.b16 %v2602, %v2602
        %v2667 = vpack.c.b16 %v2603, %v2603
        %v2668 = vpack.c.b16 %v2604, %v2604
        %v2669 = vpack.c.b16 %v2605, %v2605
        %v2670 = vpack.c.b16 %v2606, %v2606
        %v2671 = vpack.c.b16 %v2607, %v2607
        %v2672 = vpack.c.b16 %v2608, %v2608
        %v2673 = vpack.c.b16 %v2609, %v2609
        %v2674 = vpack.c.b16 %v2610, %v2610
        %v2675 = vpack.c.b16 %v2611, %v2611
        %v2676 = vpack.c.b16 %v2612, %v2612
        %v2677 = vpack.c.b16 %v2613, %v2613
        %v2678 = vpack.c.b16 %v2614, %v2614
        %v2679 = vpack.c.b16 %v2615, %v2615
        %v2680 = vpack.c.b16 %v2616, %v2616
        %v2681 = vpack.c.b16 %v2617, %v2617
        %v2682 = vpack.c.b16 %v2618, %v2618
        %v2683 = vpack.c.b16 %v2619, %v2619
        %v2684 = vpack.c.b16 %v2620, %v2620
        %v2685 = vpack.c.b16 %v2621, %v2621
        %v2686 = vpack.c.b16 %v2622, %v2622
        %v2687 = vpack.c.b16 %v2623, %v2623
        %v2688 = vpack.c.b16 %v2624, %v2624
        %v2689 = vpack.c.b16 %v2625, %v2625
        %v2690 = vpack.c.b16 %v2626, %v2626
        %v2691 = vpack.c.b16 %v2627, %v2627
        %v2692 = vpack.c.b16 %v2628, %v2628
        %v2693 = vpack.c.b16 %v2629, %v2629
        %v2694 = vpack.c.b16 %v2630, %v2630
        %v2695 = vpack.c.b16 %v2631, %v2631
        %v2696 = vpack.c.b16 %v2632, %v2632
        %v2697 = vpack.c.b16 %v2633, %v2633
        %v2698 = vpack.c.b16 %v2634, %v2634
        %v2699 = vpack.c.b16 %v2635, %v2635
        %v2700 = vpack.c.b16 %v2636, %v2636
        %v2701 = vpack.c.b16 %v2637, %v2637
        %v2702 = vpack.c.b16 %v2638, %v2638
        %v2703 = vpack.c.b16 %v2639, %v2639
        %v2704 = vpack.c.b16 %v2640, %v2640
        %v2705 = vpack.c.b16 %v2641, %v2641
        %v2706 = vpack.c.b16 %v2642, %v2642
        %v2707 = vpack.c.b16 %v2643, %v2643
        %v2708 = vpack.c.b16 %v2644, %v2644
        %v2709 = vpack.c.b16 %v2645, %v2645
        %v2710 = vpack.c.b16 %v2646, %v2646
        %v2711 = vpack.c.b16 %v2647, %v2647
        %v2712 = vpack.c.b16 %v2648, %v2648
        %v2713 = vpack.c.b16 %v2649, %v2649
        %v2714 = vpack.c.b16 %v2650, %v2650
        %2779 = vst [vmem:[%s204] sm:$0xf] %v2651
        %2780 = vst [vmem:[%s204 + $0x4] sm:$0xf] %v2652
        %2781 = vst [vmem:[%s204 + $0x8] sm:$0xf] %v2653
        %2782 = vst [vmem:[%s204 + $0xc] sm:$0xf] %v2654
        %2783 = vst [vmem:[%s204 + $0x10] sm:$0xf] %v2655
        %2784 = vst [vmem:[%s204 + $0x14] sm:$0xf] %v2656
        %2785 = vst [vmem:[%s204 + $0x18] sm:$0xf] %v2657
        %2786 = vst [vmem:[%s204 + $0x1c] sm:$0xf] %v2658
        %2787 = vst [vmem:[%s204 + $0x20] sm:$0xf] %v2659
        %2788 = vst [vmem:[%s204 + $0x24] sm:$0xf] %v2660
        %2789 = vst [vmem:[%s204 + $0x28] sm:$0xf] %v2661
        %2790 = vst [vmem:[%s204 + $0x2c] sm:$0xf] %v2662
        %2791 = vst [vmem:[%s204 + $0x30] sm:$0xf] %v2663
        %2792 = vst [vmem:[%s204 + $0x34] sm:$0xf] %v2664
        %2793 = vst [vmem:[%s204 + $0x38] sm:$0xf] %v2665
        %2794 = vst [vmem:[%s204 + $0x3c] sm:$0xf] %v2666
        %2795 = vst [vmem:[%s204 + $0x40] sm:$0xf] %v2667
        %2796 = vst [vmem:[%s204 + $0x44] sm:$0xf] %v2668
        %2797 = vst [vmem:[%s204 + $0x48] sm:$0xf] %v2669
        %2798 = vst [vmem:[%s204 + $0x4c] sm:$0xf] %v2670
        %2799 = vst [vmem:[%s204 + $0x50] sm:$0xf] %v2671
        %2800 = vst [vmem:[%s204 + $0x54] sm:$0xf] %v2672
        %2801 = vst [vmem:[%s204 + $0x58] sm:$0xf] %v2673
        %2802 = vst [vmem:[%s204 + $0x5c] sm:$0xf] %v2674
        %2803 = vst [vmem:[%s204 + $0x60] sm:$0xf] %v2675
        %2804 = vst [vmem:[%s204 + $0x64] sm:$0xf] %v2676
        %2805 = vst [vmem:[%s204 + $0x68] sm:$0xf] %v2677
        %2806 = vst [vmem:[%s204 + $0x6c] sm:$0xf] %v2678
        %2807 = vst [vmem:[%s204 + $0x70] sm:$0xf] %v2679
        %2808 = vst [vmem:[%s204 + $0x74] sm:$0xf] %v2680
        %2809 = vst [vmem:[%s204 + $0x78] sm:$0xf] %v2681
        %2810 = vst [vmem:[%s204 + $0x7c] sm:$0xf] %v2682
        %2811 = vst [vmem:[%s204 + $0x80] sm:$0xf] %v2683
        %2812 = vst [vmem:[%s204 + $0x84] sm:$0xf] %v2684
        %2813 = vst [vmem:[%s204 + $0x88] sm:$0xf] %v2685
        %2814 = vst [vmem:[%s204 + $0x8c] sm:$0xf] %v2686
        %2815 = vst [vmem:[%s204 + $0x90] sm:$0xf] %v2687
        %2816 = vst [vmem:[%s204 + $0x94] sm:$0xf] %v2688
        %2817 = vst [vmem:[%s204 + $0x98] sm:$0xf] %v2689
        %2818 = vst [vmem:[%s204 + $0x9c] sm:$0xf] %v2690
        %2819 = vst [vmem:[%s204 + $0xa0] sm:$0xf] %v2691
        %2820 = vst [vmem:[%s204 + $0xa4] sm:$0xf] %v2692
        %2821 = vst [vmem:[%s204 + $0xa8] sm:$0xf] %v2693
        %2822 = vst [vmem:[%s204 + $0xac] sm:$0xf] %v2694
        %2823 = vst [vmem:[%s204 + $0xb0] sm:$0xf] %v2695
        %2824 = vst [vmem:[%s204 + $0xb4] sm:$0xf] %v2696
        %2825 = vst [vmem:[%s204 + $0xb8] sm:$0xf] %v2697
        %2826 = vst [vmem:[%s204 + $0xbc] sm:$0xf] %v2698
        %2827 = vst [vmem:[%s204 + $0xc0] sm:$0xf] %v2699
        %2828 = vst [vmem:[%s204 + $0xc4] sm:$0xf] %v2700
        %2829 = vst [vmem:[%s204 + $0xc8] sm:$0xf] %v2701
        %2830 = vst [vmem:[%s204 + $0xcc] sm:$0xf] %v2702
        %2831 = vst [vmem:[%s204 + $0xd0] sm:$0xf] %v2703
        %2832 = vst [vmem:[%s204 + $0xd4] sm:$0xf] %v2704
        %2833 = vst [vmem:[%s204 + $0xd8] sm:$0xf] %v2705
        %2834 = vst [vmem:[%s204 + $0xdc] sm:$0xf] %v2706
        %2835 = vst [vmem:[%s204 + $0xe0] sm:$0xf] %v2707
        %2836 = vst [vmem:[%s204 + $0xe4] sm:$0xf] %v2708
        %2837 = vst [vmem:[%s204 + $0xe8] sm:$0xf] %v2709
        %2838 = vst [vmem:[%s204 + $0xec] sm:$0xf] %v2710
        %2839 = vst [vmem:[%s204 + $0xf0] sm:$0xf] %v2711
        %2840 = vst [vmem:[%s204 + $0xf4] sm:$0xf] %v2712
        %2841 = vst [vmem:[%s204 + $0xf8] sm:$0xf] %v2713
        %2842 = vst [vmem:[%s204 + $0xfc] sm:$0xf] %v2714
        %s2843 = sand.u32 %s129, 1
        %s2844 = scalar_lea.sflag [#allocation3], %s2843
        %s2845 = sand.u32 %s129, 1
        %s2846 = smul.addr %s2845, 256
        %s2847 = scalar_lea.vmem [#allocation2], %s2846
        // Predicated region
        $region37: #{tpu_custom_call.1} parent=35 // pred_check
          %p2848 = pneg %p139
        $region38: #{tpu_custom_call.1} parent=35 // pred_check_branch
          %2850 = sbr.rel (%p2848) target = $region40
        $region39: #{tpu_custom_call.1} parent=35 // pred_region
          %s2851 = smul.u32 64, %s23
          %s2853 = ssub.s32 4096, 4096
          %2854 = vsyncadd %s2844, %s2853
          %s2855 = smul.addr %s22, 128
          %s2856 = sadd.s32 %s2851, %s2855
          %s2857 = smul.addr %s2856, 64
          %s2858 = scalar_lea.hbm %s4, %s2857
          %s2859 = sshll.u32 %s2847, 4
          %s2860 = int_to_ptr.vmem [resolvable:$true] %s2859
          %2865 = dma.vmem_to_hbm [thread:$0]  %s2860, 4096, %s2858, %s2844, 64, 64, 4
        $region40: #{tpu_custom_call.1} parent=35 // pred_fallthru
          _
      $region36: #{tpu_custom_call.1} parent=5 // pred_fallthru
        _
      %p2866 = scmp.le.s32.totalorder 2, %s13
      // Predicated region
      $region41: #{tpu_custom_call.1} parent=5 // pred_check
        %p2867 = pneg %p2866
      $region42: #{tpu_custom_call.1} parent=5 // pred_check_branch
        %2869 = sbr.rel (%p2867) target = $region44
      $region43: #{tpu_custom_call.1} parent=5 // pred_region
        %s2870 = ssub.s32 %s13, 2
        // Predicated region
        $region45: #{tpu_custom_call.1} parent=43 // pred_check
          %p2871 = pneg %p145
        $region46: #{tpu_custom_call.1} parent=43 // pred_check_branch
          %2873 = sbr.rel (%p2871) target = $region48
        $region47: #{tpu_custom_call.1} parent=43 // pred_region
          %s2874 = sand.u32 %s130, 1
          %s2875 = scalar_lea.sflag [#allocation3], %s2874
          %s2876 = sand.u32 %s130, 1
          %s2877 = smul.addr %s2876, 256
          %s2878 = scalar_lea.vmem [#allocation2], %s2877
          %2879 = dma.done %s2875, 4096
        $region48: #{tpu_custom_call.1} parent=43 // pred_fallthru
          _
      $region44: #{tpu_custom_call.1} parent=5 // pred_fallthru
        _
    $region6: #{tpu_custom_call.1} parent=1 // loop_footer
      %s17 = sadd.s32 1, %s13
    $region7: #{tpu_custom_call.1} parent=1 // loop_footer_branch
      %12 = sbr.rel target = $region3
    $region8: #{tpu_custom_call.1} parent=1 // loop_exit
      _
    %2880 = vsyncpa [#allocation3], 1
    %s2881 = scalar_lea.sflag [#allocation3], 1
    %2882 = vsyncpa %s2881, 1

</llo_original>
